<compile_context>
chip_gen: v7x
topology: tpu7x:2x2x1
jax: 0.10.0
libtpu: 0.0.40
codegen_flags: <defaults>
</compile_context>

<pallas_src>
import jax
import jax.numpy as jnp
from jax.experimental import pallas as pl
from jax.experimental.pallas import tpu as pltpu


# ---------------------------------------------------------------------------
# Pallas kernel: one grid step == one block of Bblk batch elements.
# ---------------------------------------------------------------------------
def _convgru_kernel(xh_ref, h_ref, wg_ref, wo_ref, bias_ref, out_ref, rh_scr):
    # xh_ref  : (Bblk, H+2, W*Cin)  bf16  [x, h] concat on channels, rows 0/H+1 zero
    # h_ref   : (Bblk, H,   W*Ch)   f32
    # wg_ref  : (3, W*Cin, 3*W*Co)  bf16  banded gate weights (r | z | o_x), per dy
    # wo_ref  : (3, W*Ch,  W*Co)    bf16  banded output-gate weights over r*h, per dy
    # bias_ref: (1, 3*W*Co)         f32   [br | bz | bo] tiled over x
    # out_ref : (Bblk, H, W*Co)     f32   lane-dense output slab
    # rh_scr  : (Bblk, H+2, W*Ch)   bf16  scratch for y-padded r*h (MXU operand only)
    Bblk, Hp2, _ = xh_ref.shape
    H = Hp2 - 2
    WCo = out_ref.shape[2]
    M = Bblk * H

    def band_conv(src_ref, w_ref):
        """3x3 'same' conv as 3 banded matmuls over dy-shifted row slabs."""
        n_in = src_ref.shape[-1]
        total = None
        for dy in range(3):                                     # static unroll
            slab = src_ref[:, dy:dy + H, :].reshape(M, n_in).astype(jnp.bfloat16)
            part = jnp.dot(slab, w_ref[dy], preferred_element_type=jnp.float32)
            total = part if total is None else total + part
        return total

    # r / z gates over [x, h] and the x-part of the output gate: one fused band.
    gates = band_conv(xh_ref, wg_ref) + bias_ref[...]           # (M, 3*W*Co) f32
    r = jax.nn.sigmoid(gates[:, :WCo])
    z = jax.nn.sigmoid(gates[:, WCo:2 * WCo])
    o_x = gates[:, 2 * WCo:]                                    # includes bo

    hc = h_ref[...].reshape(M, WCo)                             # (M, W*Ch), Ch == Co
    rh = r * hc                                                 # f32 elementwise

    # Stage y-padded r*h (bf16, MXU operand); zero only the 2 halo rows.
    rh_scr[:, 0:1, :] = jnp.zeros((Bblk, 1, WCo), jnp.bfloat16)
    rh_scr[:, H + 1:H + 2, :] = jnp.zeros((Bblk, 1, WCo), jnp.bfloat16)
    rh_scr[:, 1:H + 1, :] = rh.reshape(Bblk, H, WCo).astype(jnp.bfloat16)

    h_tilde = jnp.maximum(o_x + band_conv(rh_scr, wo_ref), 0.0)
    out_ref[...] = (z * hc + (1.0 - z) * h_tilde).reshape(Bblk, H, WCo)


# ---------------------------------------------------------------------------
# Parameter setup (spectral norm is plain-JAX preprocessing, not the hot path).
# ---------------------------------------------------------------------------
def _spectral_normalize(w, key, n_iter=50, eps=1e-4):
    """PyTorch-style spectral norm of a Conv2d weight (Co, Ci, kh, kw)."""
    co = w.shape[0]
    wm = w.reshape(co, -1)
    u = jax.random.normal(key, (co,), dtype=w.dtype)
    u = u / (jnp.linalg.norm(u) + eps)
    v = None
    for _ in range(n_iter):
        v = wm.T @ u
        v = v / (jnp.linalg.norm(v) + eps)
        u = wm @ v
        u = u / (jnp.linalg.norm(u) + eps)
    sigma = u @ (wm @ v)
    return w / sigma


def make_params(key, cx, ch, co, k=3):
    """Deterministic synthetic parameters for the 3 gate convs (OIHW + bias)."""
    cin = cx + ch
    keys = jax.random.split(key, 9)

    def make(kw, kb, ku):
        w = 0.1 * jax.random.normal(kw, (co, cin, k, k), jnp.float32)
        b = 0.1 * jax.random.normal(kb, (co,), jnp.float32)
        return _spectral_normalize(w, ku), b

    wr, br = make(keys[0], keys[1], keys[2])
    wz, bz = make(keys[3], keys[4], keys[5])
    wo, bo = make(keys[6], keys[7], keys[8])
    return (wr, br), (wz, bz), (wo, bo)


# ---------------------------------------------------------------------------
# Banded-weight construction (wrapper side, runs once).
# ---------------------------------------------------------------------------
def _prep_weights(params, cx, ch, w_dim, compute_dtype=jnp.bfloat16):
    (wr, br), (wz, bz), (wo, bo) = params
    co = wr.shape[0]
    cin = cx + ch
    W = w_dim

    def hwio(w):  # OIHW -> HWIO
        return jnp.transpose(w, (2, 3, 1, 0))

    wr_h, wz_h, wo_h = hwio(wr), hwio(wz), hwio(wo)          # (3, 3, Cin, Co)

    # output gate splits: x-part goes into the fused gate matmul (h rows zeroed),
    # h-part is applied to r*h in a separate band.
    x_mask = (jnp.arange(cin) < cx).astype(wr.dtype)[None, None, :, None]
    wo_x = wo_h * x_mask
    wo_rh = wo_h[:, :, cx:, :]                               # (3, 3, Ch, Co)

    # shift[dx][x_in, x_out] = 1  iff  x_in == x_out + dx - 1 (in range)
    shift = jnp.stack([jnp.eye(W, k=1, dtype=jnp.float32),
                       jnp.eye(W, k=0, dtype=jnp.float32),
                       jnp.eye(W, k=-1, dtype=jnp.float32)], axis=0)

    # fused gate band: rows (x_in, cin), cols (gate, x_out, co)
    wtaps = jnp.stack([wr_h, wz_h, wo_x], axis=3)            # (3,3,Cin,3,Co)
    band_g = jnp.einsum('bio,abcge->aicgoe', shift, wtaps)
    band_g = band_g.reshape(3, W * cin, 3 * W * co).astype(compute_dtype)

    # output-gate band over r*h: rows (x_in, ch), cols (x_out, co)
    band_o = jnp.einsum('bio,abce->aicoe', shift, wo_rh)
    band_o = band_o.reshape(3, W * ch, W * co).astype(compute_dtype)

    bias = jnp.concatenate([jnp.tile(br, W), jnp.tile(bz, W), jnp.tile(bo, W)])
    bias = bias.reshape(1, 3 * W * co).astype(jnp.float32)
    return band_g, band_o, bias


# ---------------------------------------------------------------------------
# Forward wrapper.
# ---------------------------------------------------------------------------
def conv_gru_forward(x, h, params, block_b=8):
    """x: (B, H, W, Cx), h: (B, H, W, Ch) in NHWC float32. Returns (out, new_state)."""
    B, H, W, Cx = x.shape
    Ch = h.shape[-1]
    (wr, _), _, _ = params
    Co = wr.shape[0]
    assert Co == Ch, "hidden channels must equal conv output channels"
    Cin = Cx + Ch

    band_g, band_o, bias = _prep_weights(params, Cx, Ch, W)

    # single fused [x, h] input, y-halo padded, lanes = W*Cin (dense), bf16 (MXU-only)
    xh = jnp.concatenate([x, h], axis=-1)                    # (B, H, W, Cin)
    xh = jnp.pad(xh, ((0, 0), (1, 1), (0, 0), (0, 0)))       # pad rows only
    xh_flat = xh.reshape(B, H + 2, W * Cin).astype(jnp.bfloat16)
    h_flat = h.reshape(B, H, W * Ch)                         # f32 for gate math

    # batch blocking
    Bblk = 1
    for cand in range(min(B, block_b), 0, -1):
        if B % cand == 0:
            Bblk = cand
            break
    grid = (B // Bblk,)

    flops = 2 * B * H * (3 * (W * Cin) * (3 * W * Co) + 3 * (W * Ch) * (W * Co))
    transcendentals = 2 * B * H * W * Co
    bytes_accessed = (4 * (h_flat.size + B * H * W * Co + bias.size)
                      + 2 * (xh_flat.size + band_g.size + band_o.size))
    cost = pl.CostEstimate(flops=int(flops),
                           transcendentals=int(transcendentals),
                           bytes_accessed=int(bytes_accessed))

    out_flat = pl.pallas_call(
        _convgru_kernel,
        out_shape=jax.ShapeDtypeStruct((B, H, W * Co), jnp.float32),
        grid=grid,
        in_specs=[
            pl.BlockSpec((Bblk, H + 2, W * Cin), lambda b: (b, 0, 0)),
            pl.BlockSpec((Bblk, H, W * Ch), lambda b: (b, 0, 0)),
            pl.BlockSpec((3, W * Cin, 3 * W * Co), lambda b: (0, 0, 0)),
            pl.BlockSpec((3, W * Ch, W * Co), lambda b: (0, 0, 0)),
            pl.BlockSpec((1, 3 * W * Co), lambda b: (0, 0)),
        ],
        out_specs=pl.BlockSpec((Bblk, H, W * Co), lambda b: (b, 0, 0)),
        scratch_shapes=[pltpu.VMEM((Bblk, H + 2, W * Ch), jnp.bfloat16)],
        compiler_params=pltpu.CompilerParams(
            dimension_semantics=("parallel",),
            vmem_limit_bytes=32 * 1024 * 1024),
        cost_estimate=cost,
    )(xh_flat, h_flat, band_g, band_o, bias)

    out = out_flat.reshape(B, H, W, Co)
    # ConvGRUCell returns (out, new_state) with new_state == out
    return out, out


# ---------------------------------------------------------------------------
# Pure-JAX reference (same math; matched bf16 matmul-operand precision).
# ---------------------------------------------------------------------------
def ref_convgru(x, h, params, compute_dtype=jnp.bfloat16):
    (wr, br), (wz, bz), (wo, bo) = params

    def conv(inp, w):
        w_hwio = jnp.transpose(w, (2, 3, 1, 0)).astype(compute_dtype)
        return jax.lax.conv_general_dilated(
            inp.astype(compute_dtype), w_hwio, (1, 1), ((1, 1), (1, 1)),
            dimension_numbers=('NHWC', 'HWIO', 'NHWC'),
            preferred_element_type=jnp.float32)

    xh = jnp.concatenate([x, h], axis=-1)
    r = jax.nn.sigmoid(conv(xh, wr) + br)
    z = jax.nn.sigmoid(conv(xh, wz) + bz)
    gi = jnp.concatenate([x, r * h], axis=-1)
    ht = jax.nn.relu(conv(gi, wo) + bo)
    out = z * h + (1.0 - z) * ht
    return out, out


if __name__ == "__main__":
    key = jax.random.PRNGKey(0)
    B, Cx, Ch, H, W = 2, 4, 8, 16, 16   # input_channels = Cx+Ch = 12, output_channels = 8
    Co = Ch

    kx, kh, kp = jax.random.split(key, 3)
    # PyTorch-style NCHW inputs
    x_nchw = jax.random.normal(kx, (B, Cx, H, W), jnp.float32)
    h_nchw = jax.random.normal(kh, (B, Ch, H, W), jnp.float32)
    params = make_params(kp, Cx, Ch, Co)

    # NCHW -> NHWC for the kernel
    x = jnp.transpose(x_nchw, (0, 2, 3, 1))
    h = jnp.transpose(h_nchw, (0, 2, 3, 1))

    out, new_state = conv_gru_forward(x, h, params)
    out = jax.block_until_ready(out)

    out_ref, _ = ref_convgru(x, h, params)
    max_err = float(jnp.max(jnp.abs(out - out_ref)))
    assert jnp.allclose(out, out_ref, atol=2e-3, rtol=2e-3), max_err

    print("KERNEL_OK")
</pallas_src>

<mosaic_0001>
module attributes {stable_mosaic.version = 11 : i64} {
  func.func @_convgru_kernel(%arg0: i32, %arg1: memref<2x18x192xbf16, #tpu.memory_space<vmem>>, %arg2: memref<2x16x128xf32, #tpu.memory_space<vmem>>, %arg3: memref<3x192x384xbf16, #tpu.memory_space<vmem>>, %arg4: memref<3x128x128xbf16, #tpu.memory_space<vmem>>, %arg5: memref<1x384xf32, #tpu.memory_space<vmem>>, %arg6: memref<2x16x128xf32, #tpu.memory_space<vmem>>, %arg7: memref<2x18x128xbf16, #tpu.memory_space<vmem>>) attributes {dimension_semantics = [#tpu.dimension_semantics<parallel>], iteration_bounds = array<i64: 1>, scalar_prefetch = 0 : i64, scratch_operands = 1 : i64, tpu.core_type = #tpu.core_type<tc>, window_params = [{transform_indices = @transform_0, window_bounds = array<i64: 2, 18, 192>}, {transform_indices = @transform_1, window_bounds = array<i64: 2, 16, 128>}, {pipeline_mode = #tpu.pipeline_mode<synchronous>, transform_indices = @transform_2, window_bounds = array<i64: 3, 192, 384>}, {pipeline_mode = #tpu.pipeline_mode<synchronous>, transform_indices = @transform_3, window_bounds = array<i64: 3, 128, 128>}, {pipeline_mode = #tpu.pipeline_mode<synchronous>, transform_indices = @transform_4, window_bounds = array<i64: 1, 384>}, {transform_indices = @transform_5, window_bounds = array<i64: 2, 16, 128>}]} {
    %c0 = arith.constant 0 : index
    %c0_0 = arith.constant 0 : index
    %c0_1 = arith.constant 0 : index
    %0 = vector.load %arg1[%c0, %c0_0, %c0_1] : memref<2x18x192xbf16, #tpu.memory_space<vmem>>, vector<2x16x192xbf16>
    %1 = vector.shape_cast %0 : vector<2x16x192xbf16> to vector<32x192xbf16>
    %c0_2 = arith.constant 0 : index
    %c0_3 = arith.constant 0 : index
    %c0_4 = arith.constant 0 : index
    %2 = vector.load %arg3[%c0_2, %c0_3, %c0_4] : memref<3x192x384xbf16, #tpu.memory_space<vmem>>, vector<1x192x384xbf16>
    %3 = vector.shape_cast %2 : vector<1x192x384xbf16> to vector<192x384xbf16>
    %cst = arith.constant dense<0.000000e+00> : vector<32x384xf32>
    %4 = tpu.matmul %1, %3, %cst {dimension_numbers = #tpu.dot_dimension_numbers<[1], [0], [0], [1], [0, 0, 1, 1], [], []>} : vector<32x192xbf16>, vector<192x384xbf16>, vector<32x384xf32> -> vector<32x384xf32>
    %c0_5 = arith.constant 0 : index
    %c1 = arith.constant 1 : index
    %c0_6 = arith.constant 0 : index
    %5 = vector.load %arg1[%c0_5, %c1, %c0_6] : memref<2x18x192xbf16, #tpu.memory_space<vmem>>, vector<2x16x192xbf16>
    %6 = vector.shape_cast %5 : vector<2x16x192xbf16> to vector<32x192xbf16>
    %c1_7 = arith.constant 1 : index
    %c0_8 = arith.constant 0 : index
    %c0_9 = arith.constant 0 : index
    %7 = vector.load %arg3[%c1_7, %c0_8, %c0_9] : memref<3x192x384xbf16, #tpu.memory_space<vmem>>, vector<1x192x384xbf16>
    %8 = vector.shape_cast %7 : vector<1x192x384xbf16> to vector<192x384xbf16>
    %cst_10 = arith.constant dense<0.000000e+00> : vector<32x384xf32>
    %9 = tpu.matmul %6, %8, %cst_10 {dimension_numbers = #tpu.dot_dimension_numbers<[1], [0], [0], [1], [0, 0, 1, 1], [], []>} : vector<32x192xbf16>, vector<192x384xbf16>, vector<32x384xf32> -> vector<32x384xf32>
    %10 = arith.addf %4, %9 : vector<32x384xf32>
    %c0_11 = arith.constant 0 : index
    %c2 = arith.constant 2 : index
    %c0_12 = arith.constant 0 : index
    %11 = vector.load %arg1[%c0_11, %c2, %c0_12] : memref<2x18x192xbf16, #tpu.memory_space<vmem>>, vector<2x16x192xbf16>
    %12 = vector.shape_cast %11 : vector<2x16x192xbf16> to vector<32x192xbf16>
    %c2_13 = arith.constant 2 : index
    %c0_14 = arith.constant 0 : index
    %c0_15 = arith.constant 0 : index
    %13 = vector.load %arg3[%c2_13, %c0_14, %c0_15] : memref<3x192x384xbf16, #tpu.memory_space<vmem>>, vector<1x192x384xbf16>
    %14 = vector.shape_cast %13 : vector<1x192x384xbf16> to vector<192x384xbf16>
    %cst_16 = arith.constant dense<0.000000e+00> : vector<32x384xf32>
    %15 = tpu.matmul %12, %14, %cst_16 {dimension_numbers = #tpu.dot_dimension_numbers<[1], [0], [0], [1], [0, 0, 1, 1], [], []>} : vector<32x192xbf16>, vector<192x384xbf16>, vector<32x384xf32> -> vector<32x384xf32>
    %16 = arith.addf %10, %15 : vector<32x384xf32>
    %c0_17 = arith.constant 0 : index
    %c0_18 = arith.constant 0 : index
    %17 = vector.load %arg5[%c0_17, %c0_18] : memref<1x384xf32, #tpu.memory_space<vmem>>, vector<1x384xf32>
    %18 = vector.broadcast %17 : vector<1x384xf32> to vector<32x384xf32>
    %19 = arith.addf %16, %18 : vector<32x384xf32>
    %20 = vector.extract_strided_slice %19 {offsets = [0, 0], sizes = [32, 128], strides = [1, 1]} : vector<32x384xf32> to vector<32x128xf32>
    %21 = arith.negf %20 : vector<32x128xf32>
    %22 = math.exp %21 : vector<32x128xf32>
    %cst_19 = arith.constant 1.000000e+00 : f32
    %23 = vector.broadcast %cst_19 : f32 to vector<32x128xf32>
    %24 = arith.addf %23, %22 : vector<32x128xf32>
    %25 = arith.divf %23, %24 : vector<32x128xf32>
    %26 = vector.extract_strided_slice %19 {offsets = [0, 128], sizes = [32, 128], strides = [1, 1]} : vector<32x384xf32> to vector<32x128xf32>
    %27 = arith.negf %26 : vector<32x128xf32>
    %28 = math.exp %27 : vector<32x128xf32>
    %cst_20 = arith.constant 1.000000e+00 : f32
    %29 = vector.broadcast %cst_20 : f32 to vector<32x128xf32>
    %30 = arith.addf %29, %28 : vector<32x128xf32>
    %31 = arith.divf %29, %30 : vector<32x128xf32>
    %32 = vector.extract_strided_slice %19 {offsets = [0, 256], sizes = [32, 128], strides = [1, 1]} : vector<32x384xf32> to vector<32x128xf32>
    %c0_21 = arith.constant 0 : index
    %c0_22 = arith.constant 0 : index
    %c0_23 = arith.constant 0 : index
    %33 = vector.load %arg2[%c0_21, %c0_22, %c0_23] : memref<2x16x128xf32, #tpu.memory_space<vmem>>, vector<2x16x128xf32>
    %34 = vector.shape_cast %33 : vector<2x16x128xf32> to vector<32x128xf32>
    %35 = arith.mulf %25, %34 : vector<32x128xf32>
    %cst_24 = arith.constant 0.000000e+00 : bf16
    %36 = vector.broadcast %cst_24 : bf16 to vector<2x1x128xbf16>
    %c0_25 = arith.constant 0 : index
    %c0_26 = arith.constant 0 : index
    %c0_27 = arith.constant 0 : index
    %37 = vector.load %arg7[%c0_25, %c0_26, %c0_27] : memref<2x18x128xbf16, #tpu.memory_space<vmem>>, vector<2x1x128xbf16>
    tpu.vector_store %arg7[%c0_25, %c0_26, %c0_27], %36 {strides = array<i32>} : memref<2x18x128xbf16, #tpu.memory_space<vmem>>, vector<2x1x128xbf16>,
    %cst_28 = arith.constant 0.000000e+00 : bf16
    %38 = vector.broadcast %cst_28 : bf16 to vector<2x1x128xbf16>
    %c0_29 = arith.constant 0 : index
    %c17 = arith.constant 17 : index
    %c0_30 = arith.constant 0 : index
    %39 = vector.load %arg7[%c0_29, %c17, %c0_30] : memref<2x18x128xbf16, #tpu.memory_space<vmem>>, vector<2x1x128xbf16>
    tpu.vector_store %arg7[%c0_29, %c17, %c0_30], %38 {strides = array<i32>} : memref<2x18x128xbf16, #tpu.memory_space<vmem>>, vector<2x1x128xbf16>,
    %40 = vector.shape_cast %35 : vector<32x128xf32> to vector<2x16x128xf32>
    %41 = arith.truncf %40 : vector<2x16x128xf32> to vector<2x16x128xbf16>
    %c0_31 = arith.constant 0 : index
    %c1_32 = arith.constant 1 : index
    %c0_33 = arith.constant 0 : index
    %42 = vector.load %arg7[%c0_31, %c1_32, %c0_33] : memref<2x18x128xbf16, #tpu.memory_space<vmem>>, vector<2x16x128xbf16>
    tpu.vector_store %arg7[%c0_31, %c1_32, %c0_33], %41 {strides = array<i32>} : memref<2x18x128xbf16, #tpu.memory_space<vmem>>, vector<2x16x128xbf16>,
    %c0_34 = arith.constant 0 : index
    %c0_35 = arith.constant 0 : index
    %c0_36 = arith.constant 0 : index
    %43 = vector.load %arg7[%c0_34, %c0_35, %c0_36] : memref<2x18x128xbf16, #tpu.memory_space<vmem>>, vector<2x16x128xbf16>
    %44 = vector.shape_cast %43 : vector<2x16x128xbf16> to vector<32x128xbf16>
    %c0_37 = arith.constant 0 : index
    %c0_38 = arith.constant 0 : index
    %c0_39 = arith.constant 0 : index
    %45 = vector.load %arg4[%c0_37, %c0_38, %c0_39] : memref<3x128x128xbf16, #tpu.memory_space<vmem>>, vector<1x128x128xbf16>
    %46 = vector.shape_cast %45 : vector<1x128x128xbf16> to vector<128x128xbf16>
    %cst_40 = arith.constant dense<0.000000e+00> : vector<32x128xf32>
    %47 = tpu.matmul %44, %46, %cst_40 {dimension_numbers = #tpu.dot_dimension_numbers<[1], [0], [0], [1], [0, 0, 1, 1], [], []>} : vector<32x128xbf16>, vector<128x128xbf16>, vector<32x128xf32> -> vector<32x128xf32>
    %c0_41 = arith.constant 0 : index
    %c1_42 = arith.constant 1 : index
    %c0_43 = arith.constant 0 : index
    %48 = vector.load %arg7[%c0_41, %c1_42, %c0_43] : memref<2x18x128xbf16, #tpu.memory_space<vmem>>, vector<2x16x128xbf16>
    %49 = vector.shape_cast %48 : vector<2x16x128xbf16> to vector<32x128xbf16>
    %c1_44 = arith.constant 1 : index
    %c0_45 = arith.constant 0 : index
    %c0_46 = arith.constant 0 : index
    %50 = vector.load %arg4[%c1_44, %c0_45, %c0_46] : memref<3x128x128xbf16, #tpu.memory_space<vmem>>, vector<1x128x128xbf16>
    %51 = vector.shape_cast %50 : vector<1x128x128xbf16> to vector<128x128xbf16>
    %cst_47 = arith.constant dense<0.000000e+00> : vector<32x128xf32>
    %52 = tpu.matmul %49, %51, %cst_47 {dimension_numbers = #tpu.dot_dimension_numbers<[1], [0], [0], [1], [0, 0, 1, 1], [], []>} : vector<32x128xbf16>, vector<128x128xbf16>, vector<32x128xf32> -> vector<32x128xf32>
    %53 = arith.addf %47, %52 : vector<32x128xf32>
    %c0_48 = arith.constant 0 : index
    %c2_49 = arith.constant 2 : index
    %c0_50 = arith.constant 0 : index
    %54 = vector.load %arg7[%c0_48, %c2_49, %c0_50] : memref<2x18x128xbf16, #tpu.memory_space<vmem>>, vector<2x16x128xbf16>
    %55 = vector.shape_cast %54 : vector<2x16x128xbf16> to vector<32x128xbf16>
    %c2_51 = arith.constant 2 : index
    %c0_52 = arith.constant 0 : index
    %c0_53 = arith.constant 0 : index
    %56 = vector.load %arg4[%c2_51, %c0_52, %c0_53] : memref<3x128x128xbf16, #tpu.memory_space<vmem>>, vector<1x128x128xbf16>
    %57 = vector.shape_cast %56 : vector<1x128x128xbf16> to vector<128x128xbf16>
    %cst_54 = arith.constant dense<0.000000e+00> : vector<32x128xf32>
    %58 = tpu.matmul %55, %57, %cst_54 {dimension_numbers = #tpu.dot_dimension_numbers<[1], [0], [0], [1], [0, 0, 1, 1], [], []>} : vector<32x128xbf16>, vector<128x128xbf16>, vector<32x128xf32> -> vector<32x128xf32>
    %59 = arith.addf %53, %58 : vector<32x128xf32>
    %60 = arith.addf %32, %59 : vector<32x128xf32>
    %cst_55 = arith.constant 0.000000e+00 : f32
    %61 = vector.broadcast %cst_55 : f32 to vector<32x128xf32>
    %62 = arith.maximumf %60, %61 : vector<32x128xf32>
    %63 = arith.mulf %31, %34 : vector<32x128xf32>
    %cst_56 = arith.constant 1.000000e+00 : f32
    %64 = vector.broadcast %cst_56 : f32 to vector<32x128xf32>
    %65 = arith.subf %64, %31 : vector<32x128xf32>
    %66 = arith.mulf %65, %62 : vector<32x128xf32>
    %67 = arith.addf %63, %66 : vector<32x128xf32>
    %68 = vector.shape_cast %67 : vector<32x128xf32> to vector<2x16x128xf32>
    %c0_57 = arith.constant 0 : index
    %c0_58 = arith.constant 0 : index
    %c0_59 = arith.constant 0 : index
    %69 = vector.load %arg6[%c0_57, %c0_58, %c0_59] : memref<2x16x128xf32, #tpu.memory_space<vmem>>, vector<2x16x128xf32>
    tpu.vector_store %arg6[%c0_57, %c0_58, %c0_59], %68 {strides = array<i32>} : memref<2x16x128xf32, #tpu.memory_space<vmem>>, vector<2x16x128xf32>,
    return
  }
  func.func @transform_0(%arg0: i32) -> (i32, i32, i32) {
    %c0_i32 = arith.constant 0 : i32
    %c0_i32_0 = arith.constant 0 : i32
    %c0_i32_1 = arith.constant 0 : i32
    return %arg0, %c0_i32, %c0_i32_0 : i32, i32, i32
  }
  func.func @transform_1(%arg0: i32) -> (i32, i32, i32) {
    %c0_i32 = arith.constant 0 : i32
    %c0_i32_0 = arith.constant 0 : i32
    %c0_i32_1 = arith.constant 0 : i32
    return %arg0, %c0_i32, %c0_i32_0 : i32, i32, i32
  }
  func.func @transform_2(%arg0: i32) -> (i32, i32, i32) {
    %c0_i32 = arith.constant 0 : i32
    %c0_i32_0 = arith.constant 0 : i32
    %c0_i32_1 = arith.constant 0 : i32
    %c0_i32_2 = arith.constant 0 : i32
    return %c0_i32, %c0_i32_0, %c0_i32_1 : i32, i32, i32
  }
  func.func @transform_3(%arg0: i32) -> (i32, i32, i32) {
    %c0_i32 = arith.constant 0 : i32
    %c0_i32_0 = arith.constant 0 : i32
    %c0_i32_1 = arith.constant 0 : i32
    %c0_i32_2 = arith.constant 0 : i32
    return %c0_i32, %c0_i32_0, %c0_i32_1 : i32, i32, i32
  }
  func.func @transform_4(%arg0: i32) -> (i32, i32) {
    %c0_i32 = arith.constant 0 : i32
    %c0_i32_0 = arith.constant 0 : i32
    %c0_i32_1 = arith.constant 0 : i32
    return %c0_i32, %c0_i32_0 : i32, i32
  }
  func.func @transform_5(%arg0: i32) -> (i32, i32, i32) {
    %c0_i32 = arith.constant 0 : i32
    %c0_i32_0 = arith.constant 0 : i32
    %c0_i32_1 = arith.constant 0 : i32
    return %arg0, %c0_i32, %c0_i32_0 : i32, i32, i32
  }
}

</mosaic_0001>

<llo_original>
// kernel: tpu_custom_call.1
$region0: #{tpu_custom_call.1}
  #allocation0 [shape = 'u32[]', space=smem, size = 0x4, offset = 0x4, fixed_abs, tag = 'smem constant byte address 0x4 - core index']
  #allocation1 [shape = 'u32[144,128]{1,0:T(1,128)}', space=vmem, size = 0x12000, scoped, tag = 'internal scratch']
  #allocation2 [shape = 'bf16[2,18,128]{2,1,0:T(8,128)(2,1)}', space=vmem, size = 0x3000, scoped, tag = 'scratch operand']
  %s0 = inlined_call_operand.vmem [shape: bf16[2,18,192], index: 0, kind: input, shape index: {}]
  %s1 = inlined_call_operand.vmem [shape: f32[2,16,128], index: 1, kind: input, shape index: {}]
  %s2 = inlined_call_operand.hbm [shape: bf16[3,192,384], index: 2, kind: input, shape index: {}]
  %s3 = inlined_call_operand.hbm [shape: bf16[3,128,128], index: 3, kind: input, shape index: {}]
  %s4 = inlined_call_operand.vmem [shape: f32[1,384], index: 4, kind: input, shape index: {}]
  %s5 = inlined_call_operand.hbm [shape: f32[2,16,128], index: 5, kind: output, shape index: {}]
  %s6 = sld [smem:[#allocation0]]
  $region38: #{tpu_custom_call.1} parent=0
    _
  %s8 = ssub.s32 1, %s6
  %s9 = scalar_select 0, %s8, %s6
  $region1: #{tpu_custom_call.1} parent=0
    #allocation3 [shape = 'u8[442368]{0}', space=vmem, size = 0x6c000, scoped, tag = 'input window, operand 2, single buffered']
    #allocation4 [shape = 's32[1]{0}', space=sflag, size = 0x4, scoped, tag = 'scoped memory for tpu_custom_call.1']
    #allocation5 [shape = 's32[1]{0}', space=sflag, size = 0x4, scoped, tag = 'scoped memory for tpu_custom_call.1']
    #allocation6 [shape = 'u8[98304]{0}', space=vmem, size = 0x18000, scoped, tag = 'input window, operand 3, single buffered']
    #allocation7 [shape = 's32[1]{0}', space=sflag, size = 0x4, scoped, tag = 'scoped memory for tpu_custom_call.1']
    #allocation8 [shape = 'u8[16384]{0}', space=vmem, size = 0x4000, scoped, tag = 'output window, operand 0, single buffered']
    %10 = vsyncpa [#allocation4], 0
    %11 = vsyncpa [#allocation7], 0
    %12 = vsyncpa [#allocation5], 0
    // Predicated region
    $region2: #{tpu_custom_call.1} parent=1 // pred_check
      _
    $region3: #{tpu_custom_call.1} parent=1 // pred_check_branch
      %14 = sbr.rel (0) target = $region5
    $region4: #{tpu_custom_call.1} parent=1 // pred_region
      _
    $region5: #{tpu_custom_call.1} parent=1 // pred_fallthru
      _
    // Predicated region
    $region6: #{tpu_custom_call.1} parent=1 // pred_check
      _
    $region7: #{tpu_custom_call.1} parent=1 // pred_check_branch
      %16 = sbr.rel (0) target = $region9
    $region8: #{tpu_custom_call.1} parent=1 // pred_region
      _
    $region9: #{tpu_custom_call.1} parent=1 // pred_fallthru
      _
    // Predicated region
    $region10: #{tpu_custom_call.1} parent=1 // pred_check
      _
    $region11: #{tpu_custom_call.1} parent=1 // pred_check_branch
      %18 = sbr.rel (0) target = $region13
    $region12: #{tpu_custom_call.1} parent=1 // pred_region
      %s20 = ssub.s32 13824, 13824
      %21 = vsyncadd [#allocation4], %s20
      %s22 = sshll.u32 [#allocation3], 4
      %s23 = int_to_ptr.vmem [resolvable:$true] %s22
      %28 = dma.hbm_to_vmem [thread:$0]  %s2, 13824, %s23, [#allocation4], 192, 192, 12
    $region13: #{tpu_custom_call.1} parent=1 // pred_fallthru
      _
    // Predicated region
    $region14: #{tpu_custom_call.1} parent=1 // pred_check
      _
    $region15: #{tpu_custom_call.1} parent=1 // pred_check_branch
      %30 = sbr.rel (0) target = $region17
    $region16: #{tpu_custom_call.1} parent=1 // pred_region
      %s32 = ssub.s32 3072, 3072
      %33 = vsyncadd [#allocation7], %s32
      %s34 = sshll.u32 [#allocation6], 4
      %s35 = int_to_ptr.vmem [resolvable:$true] %s34
      %40 = dma.hbm_to_vmem [thread:$0]  %s3, 3072, %s35, [#allocation7], 64, 64, 4
    $region17: #{tpu_custom_call.1} parent=1 // pred_fallthru
      _
    // Predicated region
    $region18: #{tpu_custom_call.1} parent=1 // pred_check
      _
    $region19: #{tpu_custom_call.1} parent=1 // pred_check_branch
      %42 = sbr.rel (0) target = $region21
    $region20: #{tpu_custom_call.1} parent=1 // pred_region
      _
    $region21: #{tpu_custom_call.1} parent=1 // pred_fallthru
      _
    // Predicated region
    $region22: #{tpu_custom_call.1} parent=1 // pred_check
      _
    $region23: #{tpu_custom_call.1} parent=1 // pred_check_branch
      %44 = sbr.rel (0) target = $region25
    $region24: #{tpu_custom_call.1} parent=1 // pred_region
      %45 = dma.done [#allocation4], 13824
    $region25: #{tpu_custom_call.1} parent=1 // pred_fallthru
      _
    // Predicated region
    $region26: #{tpu_custom_call.1} parent=1 // pred_check
      _
    $region27: #{tpu_custom_call.1} parent=1 // pred_check_branch
      %47 = sbr.rel (0) target = $region29
    $region28: #{tpu_custom_call.1} parent=1 // pred_region
      %48 = dma.done [#allocation7], 3072
    $region29: #{tpu_custom_call.1} parent=1 // pred_fallthru
      _
    %v50 = vld [vmem:[%s0] sm:$0xff]
    %v51 = vld [vmem:[%s0 + $0x8] sm:$0xff]
    %v52 = vld [vmem:[%s0 + $0x18] sm:$0xff]
    %v53 = vld [vmem:[%s0 + $0x20] sm:$0xff]
    %v54 = vld [vmem:[#allocation3] sm:$0xff]
    %v55 = vld [vmem:[#allocation3 + $0x8] sm:$0xf]
    %v56 = vld [vmem:[#allocation3 + $0xc] sm:$0xff]
    %v57 = vld [vmem:[#allocation3 + $0x14] sm:$0xf]
    %v58 = vld [vmem:[#allocation3 + $0x18] sm:$0xff]
    %v59 = vld [vmem:[#allocation3 + $0x20] sm:$0xf]
    %v60 = vld [vmem:[#allocation3 + $0x24] sm:$0xff]
    %v61 = vld [vmem:[#allocation3 + $0x2c] sm:$0xf]
    %v62 = vld [vmem:[#allocation3 + $0x30] sm:$0xff]
    %v63 = vld [vmem:[#allocation3 + $0x38] sm:$0xf]
    %v64 = vld [vmem:[#allocation3 + $0x3c] sm:$0xff]
    %v65 = vld [vmem:[#allocation3 + $0x44] sm:$0xf]
    %v66 = vld [vmem:[#allocation3 + $0x48] sm:$0xff]
    %v67 = vld [vmem:[#allocation3 + $0x50] sm:$0xf]
    %v68 = vld [vmem:[#allocation3 + $0x54] sm:$0xff]
    %v69 = vld [vmem:[#allocation3 + $0x5c] sm:$0xf]
    %v70 = vld [vmem:[#allocation3 + $0x60] sm:$0xff]
    %v71 = vld [vmem:[#allocation3 + $0x68] sm:$0xf]
    %v72 = vld [vmem:[#allocation3 + $0x6c] sm:$0xff]
    %v73 = vld [vmem:[#allocation3 + $0x74] sm:$0xf]
    %v74 = vld [vmem:[#allocation3 + $0x78] sm:$0xff]
    %v75 = vld [vmem:[#allocation3 + $0x80] sm:$0xf]
    %v76 = vld [vmem:[#allocation3 + $0x84] sm:$0xff]
    %v77 = vld [vmem:[#allocation3 + $0x8c] sm:$0xf]
    %v78 = vld [vmem:[#allocation3 + $0x90] sm:$0xff]
    %v79 = vld [vmem:[#allocation3 + $0x98] sm:$0xf]
    %v80 = vld [vmem:[#allocation3 + $0x9c] sm:$0xff]
    %v81 = vld [vmem:[#allocation3 + $0xa4] sm:$0xf]
    %v82 = vld [vmem:[#allocation3 + $0xa8] sm:$0xff]
    %v83 = vld [vmem:[#allocation3 + $0xb0] sm:$0xf]
    %v84 = vld [vmem:[#allocation3 + $0xb4] sm:$0xff]
    %v85 = vld [vmem:[#allocation3 + $0xbc] sm:$0xf]
    %v86 = vld [vmem:[#allocation3 + $0xc0] sm:$0xff]
    %v87 = vld [vmem:[#allocation3 + $0xc8] sm:$0xf]
    %v88 = vld [vmem:[#allocation3 + $0xcc] sm:$0xff]
    %v89 = vld [vmem:[#allocation3 + $0xd4] sm:$0xf]
    %v90 = vld [vmem:[#allocation3 + $0xd8] sm:$0xff]
    %v91 = vld [vmem:[#allocation3 + $0xe0] sm:$0xf]
    %v92 = vld [vmem:[#allocation3 + $0xe4] sm:$0xff]
    %v93 = vld [vmem:[#allocation3 + $0xec] sm:$0xf]
    %v94 = vld [vmem:[#allocation3 + $0xf0] sm:$0xff]
    %v95 = vld [vmem:[#allocation3 + $0xf8] sm:$0xf]
    %v96 = vld [vmem:[#allocation3 + $0xfc] sm:$0xff]
    %v97 = vld [vmem:[#allocation3 + $0x104] sm:$0xf]
    %v98 = vld [vmem:[#allocation3 + $0x108] sm:$0xff]
    %v99 = vld [vmem:[#allocation3 + $0x110] sm:$0xf]
    %v100 = vld [vmem:[#allocation3 + $0x114] sm:$0xff]
    %v101 = vld [vmem:[#allocation3 + $0x11c] sm:$0xf]
    %v102 = vld [vmem:[%s0 + $0x10] sm:$0x11]
    %v103 = vld [vmem:[%s0 + $0x28] sm:$0x11]
    %vm104 = vsmask.f32 3328
    %vm105 = vsmask.f32 7440
    %vm106 = vmor %vm104, %vm105
    %v108 = vshrl.u32 %v50, 16
    %v110 = vrot.slane %v108, 4
    %v111 = vshll.u32 %v50, 16
    %v113 = vrot.slane %v111, 5
    %v114 = vor.u32 %v110, %v113
    %v115 = vrot.slane %v114, 4
    %v117 = vshll.u32 %v51, 16
    %v119 = vrot.slane %v117, 5
    %v120 = vsel %vm106, %v115, %v119
    %v121 = vshrl.u32 %v51, 16
    %v123 = vrot.slane %v121, 4
    %v124 = vor.u32 %v123, %v119
    %v125 = vrot.slane %v124, 4
    %v127 = vshll.u32 %v102, 16
    %v129 = vrot.slane %v127, 5
    %v130 = vsel %vm106, %v125, %v129
    %v132 = vshrl.u32 %v52, 16
    %v134 = vrot.slane %v132, 4
    %v135 = vshll.u32 %v52, 16
    %v137 = vrot.slane %v135, 5
    %v138 = vor.u32 %v134, %v137
    %v139 = vrot.slane %v138, 4
    %v141 = vshll.u32 %v53, 16
    %v143 = vrot.slane %v141, 5
    %v144 = vsel %vm106, %v139, %v143
    %v145 = vshrl.u32 %v53, 16
    %v147 = vrot.slane %v145, 4
    %v148 = vor.u32 %v147, %v143
    %v149 = vrot.slane %v148, 4
    %v151 = vshll.u32 %v103, 16
    %v153 = vrot.slane %v151, 5
    %v154 = vsel %vm106, %v149, %v153
    %s155 = scalar_lea.vmem [#allocation3], 288
    %v156 = vld [vmem:[%s155] sm:$0xff]
    %v157 = vld [vmem:[%s155 + $0x8] sm:$0xf]
    %v158 = vld [vmem:[%s155 + $0xc] sm:$0xff]
    %v159 = vld [vmem:[%s155 + $0x14] sm:$0xf]
    %v160 = vld [vmem:[%s155 + $0x18] sm:$0xff]
    %v161 = vld [vmem:[%s155 + $0x20] sm:$0xf]
    %v162 = vld [vmem:[%s155 + $0x24] sm:$0xff]
    %v163 = vld [vmem:[%s155 + $0x2c] sm:$0xf]
    %v164 = vld [vmem:[%s155 + $0x30] sm:$0xff]
    %v165 = vld [vmem:[%s155 + $0x38] sm:$0xf]
    %v166 = vld [vmem:[%s155 + $0x3c] sm:$0xff]
    %v167 = vld [vmem:[%s155 + $0x44] sm:$0xf]
    %v168 = vld [vmem:[%s155 + $0x48] sm:$0xff]
    %v169 = vld [vmem:[%s155 + $0x50] sm:$0xf]
    %v170 = vld [vmem:[%s155 + $0x54] sm:$0xff]
    %v171 = vld [vmem:[%s155 + $0x5c] sm:$0xf]
    %v172 = vld [vmem:[%s155 + $0x60] sm:$0xff]
    %v173 = vld [vmem:[%s155 + $0x68] sm:$0xf]
    %v174 = vld [vmem:[%s155 + $0x6c] sm:$0xff]
    %v175 = vld [vmem:[%s155 + $0x74] sm:$0xf]
    %v176 = vld [vmem:[%s155 + $0x78] sm:$0xff]
    %v177 = vld [vmem:[%s155 + $0x80] sm:$0xf]
    %v178 = vld [vmem:[%s155 + $0x84] sm:$0xff]
    %v179 = vld [vmem:[%s155 + $0x8c] sm:$0xf]
    %v180 = vld [vmem:[%s155 + $0x90] sm:$0xff]
    %v181 = vld [vmem:[%s155 + $0x98] sm:$0xf]
    %v182 = vld [vmem:[%s155 + $0x9c] sm:$0xff]
    %v183 = vld [vmem:[%s155 + $0xa4] sm:$0xf]
    %v184 = vld [vmem:[%s155 + $0xa8] sm:$0xff]
    %v185 = vld [vmem:[%s155 + $0xb0] sm:$0xf]
    %v186 = vld [vmem:[%s155 + $0xb4] sm:$0xff]
    %v187 = vld [vmem:[%s155 + $0xbc] sm:$0xf]
    %v188 = vld [vmem:[%s155 + $0xc0] sm:$0xff]
    %v189 = vld [vmem:[%s155 + $0xc8] sm:$0xf]
    %v190 = vld [vmem:[%s155 + $0xcc] sm:$0xff]
    %v191 = vld [vmem:[%s155 + $0xd4] sm:$0xf]
    %v192 = vld [vmem:[%s155 + $0xd8] sm:$0xff]
    %v193 = vld [vmem:[%s155 + $0xe0] sm:$0xf]
    %v194 = vld [vmem:[%s155 + $0xe4] sm:$0xff]
    %v195 = vld [vmem:[%s155 + $0xec] sm:$0xf]
    %v196 = vld [vmem:[%s155 + $0xf0] sm:$0xff]
    %v197 = vld [vmem:[%s155 + $0xf8] sm:$0xf]
    %v198 = vld [vmem:[%s155 + $0xfc] sm:$0xff]
    %v199 = vld [vmem:[%s155 + $0x104] sm:$0xf]
    %v200 = vld [vmem:[%s155 + $0x108] sm:$0xff]
    %v201 = vld [vmem:[%s155 + $0x110] sm:$0xf]
    %v202 = vld [vmem:[%s155 + $0x114] sm:$0xff]
    %v203 = vld [vmem:[%s155 + $0x11c] sm:$0xf]
    %v204 = vunpack.c.l.b16 %v120
    %v205 = vunpack.c.h.b16 %v120
    %v206 = vunpack.c.l.b16 %v130
    %v207 = vunpack.c.h.b16 %v130
    %v208 = vunpack.c.l.b16 %v144
    %v209 = vunpack.c.h.b16 %v144
    %v210 = vunpack.c.l.b16 %v154
    %v211 = vunpack.c.h.b16 %v154
    %v212 = vpack.c.b16 %v206, %v204
    %v213 = vpack.c.b16 %v207, %v205
    %v214 = vpack.c.b16 %v210, %v208
    %v215 = vpack.c.b16 %v211, %v209
    %v266 = vunpack.c.l.b16 %v156
    %v267 = vunpack.c.h.b16 %v156
    %v268 = vunpack.c.l.b16 %v157
    %v269 = vunpack.c.l.b16 %v158
    %v270 = vunpack.c.h.b16 %v158
    %v271 = vunpack.c.l.b16 %v159
    %v272 = vunpack.c.l.b16 %v160
    %v273 = vunpack.c.h.b16 %v160
    %v274 = vunpack.c.l.b16 %v161
    %v275 = vunpack.c.l.b16 %v162
    %v276 = vunpack.c.h.b16 %v162
    %v277 = vunpack.c.l.b16 %v163
    %v278 = vunpack.c.l.b16 %v164
    %v279 = vunpack.c.h.b16 %v164
    %v280 = vunpack.c.l.b16 %v165
    %v281 = vunpack.c.l.b16 %v166
    %v282 = vunpack.c.h.b16 %v166
    %v283 = vunpack.c.l.b16 %v167
    %v284 = vunpack.c.l.b16 %v168
    %v285 = vunpack.c.h.b16 %v168
    %v286 = vunpack.c.l.b16 %v169
    %v287 = vunpack.c.l.b16 %v170
    %v288 = vunpack.c.h.b16 %v170
    %v289 = vunpack.c.l.b16 %v171
    %v290 = vunpack.c.l.b16 %v172
    %v291 = vunpack.c.h.b16 %v172
    %v292 = vunpack.c.l.b16 %v173
    %v293 = vunpack.c.l.b16 %v174
    %v294 = vunpack.c.h.b16 %v174
    %v295 = vunpack.c.l.b16 %v175
    %v296 = vunpack.c.l.b16 %v176
    %v297 = vunpack.c.h.b16 %v176
    %v298 = vunpack.c.l.b16 %v177
    %v299 = vunpack.c.l.b16 %v178
    %v300 = vunpack.c.h.b16 %v178
    %v301 = vunpack.c.l.b16 %v179
    %v302 = vunpack.c.l.b16 %v180
    %v303 = vunpack.c.h.b16 %v180
    %v304 = vunpack.c.l.b16 %v181
    %v305 = vunpack.c.l.b16 %v182
    %v306 = vunpack.c.h.b16 %v182
    %v307 = vunpack.c.l.b16 %v183
    %v308 = vunpack.c.l.b16 %v184
    %v309 = vunpack.c.h.b16 %v184
    %v310 = vunpack.c.l.b16 %v185
    %v311 = vunpack.c.l.b16 %v186
    %v312 = vunpack.c.h.b16 %v186
    %v313 = vunpack.c.l.b16 %v187
    %v314 = vunpack.c.l.b16 %v188
    %v315 = vunpack.c.h.b16 %v188
    %v316 = vunpack.c.l.b16 %v189
    %v317 = vunpack.c.l.b16 %v190
    %v318 = vunpack.c.h.b16 %v190
    %v319 = vunpack.c.l.b16 %v191
    %v320 = vunpack.c.l.b16 %v192
    %v321 = vunpack.c.h.b16 %v192
    %v322 = vunpack.c.l.b16 %v193
    %v323 = vunpack.c.l.b16 %v194
    %v324 = vunpack.c.h.b16 %v194
    %v325 = vunpack.c.l.b16 %v195
    %v326 = vunpack.c.l.b16 %v196
    %v327 = vunpack.c.h.b16 %v196
    %v328 = vunpack.c.l.b16 %v197
    %v329 = vunpack.c.l.b16 %v198
    %v330 = vunpack.c.h.b16 %v198
    %v331 = vunpack.c.l.b16 %v199
    %v332 = vunpack.c.l.b16 %v200
    %v333 = vunpack.c.h.b16 %v200
    %v334 = vunpack.c.l.b16 %v201
    %v335 = vunpack.c.l.b16 %v202
    %v336 = vunpack.c.h.b16 %v202
    %v337 = vunpack.c.l.b16 %v203
    %v338 = vpack.c.b16 %v269, %v266
    %v339 = vpack.c.b16 %v270, %v267
    %v340 = vpack.c.b16 %v271, %v268
    %v341 = vpack.c.b16 %v275, %v272
    %v342 = vpack.c.b16 %v276, %v273
    %v343 = vpack.c.b16 %v277, %v274
    %v344 = vpack.c.b16 %v281, %v278
    %v345 = vpack.c.b16 %v282, %v279
    %v346 = vpack.c.b16 %v283, %v280
    %v347 = vpack.c.b16 %v287, %v284
    %v348 = vpack.c.b16 %v288, %v285
    %v349 = vpack.c.b16 %v289, %v286
    %v350 = vpack.c.b16 %v293, %v290
    %v351 = vpack.c.b16 %v294, %v291
    %v352 = vpack.c.b16 %v295, %v292
    %v353 = vpack.c.b16 %v299, %v296
    %v354 = vpack.c.b16 %v300, %v297
    %v355 = vpack.c.b16 %v301, %v298
    %v356 = vpack.c.b16 %v305, %v302
    %v357 = vpack.c.b16 %v306, %v303
    %v358 = vpack.c.b16 %v307, %v304
    %v359 = vpack.c.b16 %v311, %v308
    %v360 = vpack.c.b16 %v312, %v309
    %v361 = vpack.c.b16 %v313, %v310
    %v362 = vpack.c.b16 %v317, %v314
    %v363 = vpack.c.b16 %v318, %v315
    %v364 = vpack.c.b16 %v319, %v316
    %v365 = vpack.c.b16 %v323, %v320
    %v366 = vpack.c.b16 %v324, %v321
    %v367 = vpack.c.b16 %v325, %v322
    %v368 = vpack.c.b16 %v329, %v326
    %v369 = vpack.c.b16 %v330, %v327
    %v370 = vpack.c.b16 %v331, %v328
    %v371 = vpack.c.b16 %v335, %v332
    %v372 = vpack.c.b16 %v336, %v333
    %v373 = vpack.c.b16 %v337, %v334
    %vm410 = vcmask 523264
    %v412 = vsel %vm410, %v213, 0
    %v415 = vsel %vm410, %v215, 0
    %417 = vmatprep.subr.bf16.mxu0 %v339
    %418 = vmatpush1.bf16.msra.mxu0 %v338
    %419 = vmatprep.subr.bf16.mxu0 %v342
    %420 = vmatpush1.bf16.msra.mxu0 %v341
    %421 = vmatprep.subr.bf16.mxu0 %v345
    %422 = vmatpush1.bf16.msra.mxu0 %v344
    %423 = vmatprep.subr.bf16.mxu0 %v348
    %424 = vmatpush1.bf16.msra.mxu0 %v347
    %425 = vmatprep.subr.bf16.mxu0 %v351
    %426 = vmatpush1.bf16.msra.mxu0 %v350
    %427 = vmatprep.subr.bf16.mxu0 %v354
    %428 = vmatpush1.bf16.msra.mxu0 %v353
    %429 = vmatprep.subr.bf16.mxu0 %v357
    %430 = vmatpush1.bf16.msra.mxu0 %v356
    %431 = vmatprep.subr.bf16.mxu0 %v360
    %432 = vmatpush1.bf16.msra.mxu0 %v359
    %433 = vmatprep.subr.bf16.mxu0 %v363
    %434 = vmatpush1.bf16.msra.mxu0 %v362
    %435 = vmatprep.subr.bf16.mxu0 %v366
    %436 = vmatpush1.bf16.msra.mxu0 %v365
    %437 = vmatprep.subr.bf16.mxu0 %v369
    %438 = vmatpush1.bf16.msra.mxu0 %v368
    %439 = vmatprep.subr.bf16.mxu0 %v372
    %440 = vmatpush1.bf16.msra.mxu0 %v371
    %441 = vmatprep.subr.bf16.mxu0 0
    %442 = vmatpush1.bf16.msra.mxu0 0
    %443 = vmatprep.subr.bf16.mxu0 0
    %444 = vmatpush1.bf16.msra.mxu0 0
    %445 = vmatprep.subr.bf16.mxu0 0
    %446 = vmatpush1.bf16.msra.mxu0 0
    %447 = vmatprep.subr.bf16.mxu0 0
    %448 = vmatpush1.bf16.msra.mxu0 0
    %449 = vmatprep.mubr.bf16.mxu0 %v412
    %450 = vmatmul.mubr.bf16.gmra.mrb[0].mxu0 %v212
    %v451 = vpop.f32.mrb[0].mxu0
    %v452 = vadd.f32 0.0, %v451
    %v453 = vpop.f32.mrb[0].mxu0
    %v454 = vadd.f32 0.0, %v453
    %v455 = vpop.f32.mrb[0].mxu0
    %v456 = vadd.f32 0.0, %v455
    %v457 = vpop.f32.mrb[0].mxu0
    %v458 = vadd.f32 0.0, %v457
    %459 = vmatprep.mubr.bf16.mxu0 %v415
    %460 = vmatmul.mubr.bf16.gmra.mrb[0].mxu0 %v214
    %v461 = vpop.f32.mrb[0].mxu0
    %v462 = vadd.f32 0.0, %v461
    %v463 = vpop.f32.mrb[0].mxu0
    %v464 = vadd.f32 0.0, %v463
    %v465 = vpop.f32.mrb[0].mxu0
    %v466 = vadd.f32 0.0, %v465
    %v467 = vpop.f32.mrb[0].mxu0
    %v468 = vadd.f32 0.0, %v467
    %469 = vdwg.mxu0
    %470 = vmatprep.subr.bf16.mxu0 0
    %471 = vmatpush1.bf16.msra.mxu0 %v340
    %472 = vmatprep.subr.bf16.mxu0 0
    %473 = vmatpush1.bf16.msra.mxu0 %v343
    %474 = vmatprep.subr.bf16.mxu0 0
    %475 = vmatpush1.bf16.msra.mxu0 %v346
    %476 = vmatprep.subr.bf16.mxu0 0
    %477 = vmatpush1.bf16.msra.mxu0 %v349
    %478 = vmatprep.subr.bf16.mxu0 0
    %479 = vmatpush1.bf16.msra.mxu0 %v352
    %480 = vmatprep.subr.bf16.mxu0 0
    %481 = vmatpush1.bf16.msra.mxu0 %v355
    %482 = vmatprep.subr.bf16.mxu0 0
    %483 = vmatpush1.bf16.msra.mxu0 %v358
    %484 = vmatprep.subr.bf16.mxu0 0
    %485 = vmatpush1.bf16.msra.mxu0 %v361
    %486 = vmatprep.subr.bf16.mxu0 0
    %487 = vmatpush1.bf16.msra.mxu0 %v364
    %488 = vmatprep.subr.bf16.mxu0 0
    %489 = vmatpush1.bf16.msra.mxu0 %v367
    %490 = vmatprep.subr.bf16.mxu0 0
    %491 = vmatpush1.bf16.msra.mxu0 %v370
    %492 = vmatprep.subr.bf16.mxu0 0
    %493 = vmatpush1.bf16.msra.mxu0 %v373
    %494 = vmatprep.subr.bf16.mxu0 0
    %495 = vmatpush1.bf16.msra.mxu0 0
    %496 = vmatprep.subr.bf16.mxu0 0
    %497 = vmatpush1.bf16.msra.mxu0 0
    %498 = vmatprep.subr.bf16.mxu0 0
    %499 = vmatpush1.bf16.msra.mxu0 0
    %500 = vmatprep.subr.bf16.mxu0 0
    %501 = vmatpush1.bf16.msra.mxu0 0
    %502 = vmatprep.mubr.bf16.mxu0 %v412
    %503 = vmatmul.mubr.bf16.gmra.mrb[0].mxu0 %v212
    %v504 = vpop.f32.mrb[0].mxu0
    %v505 = vadd.f32 0.0, %v504
    %v506 = vpop.f32.mrb[0].mxu0
    %v507 = vpop.f32.mrb[0].mxu0
    %v508 = vadd.f32 0.0, %v507
    %v509 = vpop.f32.mrb[0].mxu0
    %510 = vmatprep.mubr.bf16.mxu0 %v415
    %511 = vmatmul.mubr.bf16.gmra.mrb[0].mxu0 %v214
    %v512 = vpop.f32.mrb[0].mxu0
    %v513 = vadd.f32 0.0, %v512
    %v514 = vpop.f32.mrb[0].mxu0
    %v515 = vpop.f32.mrb[0].mxu0
    %v516 = vadd.f32 0.0, %v515
    %v517 = vpop.f32.mrb[0].mxu0
    %518 = vdwg.mxu0
    %v523 = vunpack.c.l.b16 %v50
    %v524 = vunpack.c.h.b16 %v50
    %v525 = vunpack.c.l.b16 %v51
    %v526 = vunpack.c.h.b16 %v51
    %v527 = vunpack.c.l.b16 %v52
    %v528 = vunpack.c.h.b16 %v52
    %v529 = vunpack.c.l.b16 %v53
    %v530 = vunpack.c.h.b16 %v53
    %v531 = vpack.c.b16 %v525, %v523
    %v532 = vpack.c.b16 %v526, %v524
    %v533 = vpack.c.b16 %v529, %v527
    %v534 = vpack.c.b16 %v530, %v528
    %v585 = vunpack.c.l.b16 %v54
    %v586 = vunpack.c.h.b16 %v54
    %v587 = vunpack.c.l.b16 %v55
    %v588 = vunpack.c.l.b16 %v56
    %v589 = vunpack.c.h.b16 %v56
    %v590 = vunpack.c.l.b16 %v57
    %v591 = vunpack.c.l.b16 %v58
    %v592 = vunpack.c.h.b16 %v58
    %v593 = vunpack.c.l.b16 %v59
    %v594 = vunpack.c.l.b16 %v60
    %v595 = vunpack.c.h.b16 %v60
    %v596 = vunpack.c.l.b16 %v61
    %v597 = vunpack.c.l.b16 %v62
    %v598 = vunpack.c.h.b16 %v62
    %v599 = vunpack.c.l.b16 %v63
    %v600 = vunpack.c.l.b16 %v64
    %v601 = vunpack.c.h.b16 %v64
    %v602 = vunpack.c.l.b16 %v65
    %v603 = vunpack.c.l.b16 %v66
    %v604 = vunpack.c.h.b16 %v66
    %v605 = vunpack.c.l.b16 %v67
    %v606 = vunpack.c.l.b16 %v68
    %v607 = vunpack.c.h.b16 %v68
    %v608 = vunpack.c.l.b16 %v69
    %v609 = vunpack.c.l.b16 %v70
    %v610 = vunpack.c.h.b16 %v70
    %v611 = vunpack.c.l.b16 %v71
    %v612 = vunpack.c.l.b16 %v72
    %v613 = vunpack.c.h.b16 %v72
    %v614 = vunpack.c.l.b16 %v73
    %v615 = vunpack.c.l.b16 %v74
    %v616 = vunpack.c.h.b16 %v74
    %v617 = vunpack.c.l.b16 %v75
    %v618 = vunpack.c.l.b16 %v76
    %v619 = vunpack.c.h.b16 %v76
    %v620 = vunpack.c.l.b16 %v77
    %v621 = vunpack.c.l.b16 %v78
    %v622 = vunpack.c.h.b16 %v78
    %v623 = vunpack.c.l.b16 %v79
    %v624 = vunpack.c.l.b16 %v80
    %v625 = vunpack.c.h.b16 %v80
    %v626 = vunpack.c.l.b16 %v81
    %v627 = vunpack.c.l.b16 %v82
    %v628 = vunpack.c.h.b16 %v82
    %v629 = vunpack.c.l.b16 %v83
    %v630 = vunpack.c.l.b16 %v84
    %v631 = vunpack.c.h.b16 %v84
    %v632 = vunpack.c.l.b16 %v85
    %v633 = vunpack.c.l.b16 %v86
    %v634 = vunpack.c.h.b16 %v86
    %v635 = vunpack.c.l.b16 %v87
    %v636 = vunpack.c.l.b16 %v88
    %v637 = vunpack.c.h.b16 %v88
    %v638 = vunpack.c.l.b16 %v89
    %v639 = vunpack.c.l.b16 %v90
    %v640 = vunpack.c.h.b16 %v90
    %v641 = vunpack.c.l.b16 %v91
    %v642 = vunpack.c.l.b16 %v92
    %v643 = vunpack.c.h.b16 %v92
    %v644 = vunpack.c.l.b16 %v93
    %v645 = vunpack.c.l.b16 %v94
    %v646 = vunpack.c.h.b16 %v94
    %v647 = vunpack.c.l.b16 %v95
    %v648 = vunpack.c.l.b16 %v96
    %v649 = vunpack.c.h.b16 %v96
    %v650 = vunpack.c.l.b16 %v97
    %v651 = vunpack.c.l.b16 %v98
    %v652 = vunpack.c.h.b16 %v98
    %v653 = vunpack.c.l.b16 %v99
    %v654 = vunpack.c.l.b16 %v100
    %v655 = vunpack.c.h.b16 %v100
    %v656 = vunpack.c.l.b16 %v101
    %v657 = vpack.c.b16 %v588, %v585
    %v658 = vpack.c.b16 %v589, %v586
    %v659 = vpack.c.b16 %v590, %v587
    %v660 = vpack.c.b16 %v594, %v591
    %v661 = vpack.c.b16 %v595, %v592
    %v662 = vpack.c.b16 %v596, %v593
    %v663 = vpack.c.b16 %v600, %v597
    %v664 = vpack.c.b16 %v601, %v598
    %v665 = vpack.c.b16 %v602, %v599
    %v666 = vpack.c.b16 %v606, %v603
    %v667 = vpack.c.b16 %v607, %v604
    %v668 = vpack.c.b16 %v608, %v605
    %v669 = vpack.c.b16 %v612, %v609
    %v670 = vpack.c.b16 %v613, %v610
    %v671 = vpack.c.b16 %v614, %v611
    %v672 = vpack.c.b16 %v618, %v615
    %v673 = vpack.c.b16 %v619, %v616
    %v674 = vpack.c.b16 %v620, %v617
    %v675 = vpack.c.b16 %v624, %v621
    %v676 = vpack.c.b16 %v625, %v622
    %v677 = vpack.c.b16 %v626, %v623
    %v678 = vpack.c.b16 %v630, %v627
    %v679 = vpack.c.b16 %v631, %v628
    %v680 = vpack.c.b16 %v632, %v629
    %v681 = vpack.c.b16 %v636, %v633
    %v682 = vpack.c.b16 %v637, %v634
    %v683 = vpack.c.b16 %v638, %v635
    %v684 = vpack.c.b16 %v642, %v639
    %v685 = vpack.c.b16 %v643, %v640
    %v686 = vpack.c.b16 %v644, %v641
    %v687 = vpack.c.b16 %v648, %v645
    %v688 = vpack.c.b16 %v649, %v646
    %v689 = vpack.c.b16 %v650, %v647
    %v690 = vpack.c.b16 %v654, %v651
    %v691 = vpack.c.b16 %v655, %v652
    %v692 = vpack.c.b16 %v656, %v653
    %v730 = vsel %vm410, %v532, 0
    %v733 = vsel %vm410, %v534, 0
    %735 = vmatprep.subr.bf16.mxu0 %v658
    %736 = vmatpush1.bf16.msra.mxu0 %v657
    %737 = vmatprep.subr.bf16.mxu0 %v661
    %738 = vmatpush1.bf16.msra.mxu0 %v660
    %739 = vmatprep.subr.bf16.mxu0 %v664
    %740 = vmatpush1.bf16.msra.mxu0 %v663
    %741 = vmatprep.subr.bf16.mxu0 %v667
    %742 = vmatpush1.bf16.msra.mxu0 %v666
    %743 = vmatprep.subr.bf16.mxu0 %v670
    %744 = vmatpush1.bf16.msra.mxu0 %v669
    %745 = vmatprep.subr.bf16.mxu0 %v673
    %746 = vmatpush1.bf16.msra.mxu0 %v672
    %747 = vmatprep.subr.bf16.mxu0 %v676
    %748 = vmatpush1.bf16.msra.mxu0 %v675
    %749 = vmatprep.subr.bf16.mxu0 %v679
    %750 = vmatpush1.bf16.msra.mxu0 %v678
    %751 = vmatprep.subr.bf16.mxu0 %v682
    %752 = vmatpush1.bf16.msra.mxu0 %v681
    %753 = vmatprep.subr.bf16.mxu0 %v685
    %754 = vmatpush1.bf16.msra.mxu0 %v684
    %755 = vmatprep.subr.bf16.mxu0 %v688
    %756 = vmatpush1.bf16.msra.mxu0 %v687
    %757 = vmatprep.subr.bf16.mxu0 %v691
    %758 = vmatpush1.bf16.msra.mxu0 %v690
    %759 = vmatprep.subr.bf16.mxu0 0
    %760 = vmatpush1.bf16.msra.mxu0 0
    %761 = vmatprep.subr.bf16.mxu0 0
    %762 = vmatpush1.bf16.msra.mxu0 0
    %763 = vmatprep.subr.bf16.mxu0 0
    %764 = vmatpush1.bf16.msra.mxu0 0
    %765 = vmatprep.subr.bf16.mxu0 0
    %766 = vmatpush1.bf16.msra.mxu0 0
    %767 = vmatprep.mubr.bf16.mxu0 %v730
    %768 = vmatmul.mubr.bf16.gmra.mrb[0].mxu0 %v531
    %v769 = vpop.f32.mrb[0].mxu0
    %v770 = vadd.f32 %v452, %v769
    %v771 = vpop.f32.mrb[0].mxu0
    %v772 = vadd.f32 %v454, %v771
    %v773 = vpop.f32.mrb[0].mxu0
    %v774 = vadd.f32 %v456, %v773
    %v775 = vpop.f32.mrb[0].mxu0
    %v776 = vadd.f32 %v458, %v775
    %777 = vmatprep.mubr.bf16.mxu0 %v733
    %778 = vmatmul.mubr.bf16.gmra.mrb[0].mxu0 %v533
    %v779 = vpop.f32.mrb[0].mxu0
    %v780 = vadd.f32 %v462, %v779
    %v781 = vpop.f32.mrb[0].mxu0
    %v782 = vadd.f32 %v464, %v781
    %v783 = vpop.f32.mrb[0].mxu0
    %v784 = vadd.f32 %v466, %v783
    %v785 = vpop.f32.mrb[0].mxu0
    %v786 = vadd.f32 %v468, %v785
    %787 = vdwg.mxu0
    %788 = vmatprep.subr.bf16.mxu0 0
    %789 = vmatpush1.bf16.msra.mxu0 %v659
    %790 = vmatprep.subr.bf16.mxu0 0
    %791 = vmatpush1.bf16.msra.mxu0 %v662
    %792 = vmatprep.subr.bf16.mxu0 0
    %793 = vmatpush1.bf16.msra.mxu0 %v665
    %794 = vmatprep.subr.bf16.mxu0 0
    %795 = vmatpush1.bf16.msra.mxu0 %v668
    %796 = vmatprep.subr.bf16.mxu0 0
    %797 = vmatpush1.bf16.msra.mxu0 %v671
    %798 = vmatprep.subr.bf16.mxu0 0
    %799 = vmatpush1.bf16.msra.mxu0 %v674
    %800 = vmatprep.subr.bf16.mxu0 0
    %801 = vmatpush1.bf16.msra.mxu0 %v677
    %802 = vmatprep.subr.bf16.mxu0 0
    %803 = vmatpush1.bf16.msra.mxu0 %v680
    %804 = vmatprep.subr.bf16.mxu0 0
    %805 = vmatpush1.bf16.msra.mxu0 %v683
    %806 = vmatprep.subr.bf16.mxu0 0
    %807 = vmatpush1.bf16.msra.mxu0 %v686
    %808 = vmatprep.subr.bf16.mxu0 0
    %809 = vmatpush1.bf16.msra.mxu0 %v689
    %810 = vmatprep.subr.bf16.mxu0 0
    %811 = vmatpush1.bf16.msra.mxu0 %v692
    %812 = vmatprep.subr.bf16.mxu0 0
    %813 = vmatpush1.bf16.msra.mxu0 0
    %814 = vmatprep.subr.bf16.mxu0 0
    %815 = vmatpush1.bf16.msra.mxu0 0
    %816 = vmatprep.subr.bf16.mxu0 0
    %817 = vmatpush1.bf16.msra.mxu0 0
    %818 = vmatprep.subr.bf16.mxu0 0
    %819 = vmatpush1.bf16.msra.mxu0 0
    %820 = vmatprep.mubr.bf16.mxu0 %v730
    %821 = vmatmul.mubr.bf16.gmra.mrb[0].mxu0 %v531
    %v822 = vpop.f32.mrb[0].mxu0
    %v823 = vadd.f32 %v505, %v822
    %v824 = vpop.f32.mrb[0].mxu0
    %v825 = vpop.f32.mrb[0].mxu0
    %v826 = vadd.f32 %v508, %v825
    %v827 = vpop.f32.mrb[0].mxu0
    %828 = vmatprep.mubr.bf16.mxu0 %v733
    %829 = vmatmul.mubr.bf16.gmra.mrb[0].mxu0 %v533
    %v830 = vpop.f32.mrb[0].mxu0
    %v831 = vadd.f32 %v513, %v830
    %v832 = vpop.f32.mrb[0].mxu0
    %v833 = vpop.f32.mrb[0].mxu0
    %v834 = vadd.f32 %v516, %v833
    %v835 = vpop.f32.mrb[0].mxu0
    %836 = vdwg.mxu0
    %v837 = vld [vmem:[%s0] sm:$0xee]
    %v838 = vld [vmem:[%s0 + $0x18] sm:$0xee]
    %vm843 = vcmask 1042432
    %vm844 = vcmask 1046532
    %vm845 = vmor %vm843, %vm844
    %v846 = vrot.slane %v837, 5
    %v847 = vrot.slane %v846, 4
    %v848 = vrot.slane %v51, 5
    %v849 = vsel %vm845, %v847, %v848
    %v850 = vrot.slane %v848, 4
    %v851 = vrot.slane %v102, 5
    %v852 = vsel %vm845, %v850, %v851
    %v853 = vrot.slane %v838, 5
    %v854 = vrot.slane %v853, 4
    %v855 = vrot.slane %v53, 5
    %v856 = vsel %vm845, %v854, %v855
    %v857 = vrot.slane %v855, 4
    %v858 = vrot.slane %v103, 5
    %v859 = vsel %vm845, %v857, %v858
    %s860 = scalar_lea.vmem [#allocation3], 576
    %v861 = vld [vmem:[%s860] sm:$0xff]
    %v862 = vld [vmem:[%s860 + $0x8] sm:$0xf]
    %v863 = vld [vmem:[%s860 + $0xc] sm:$0xff]
    %v864 = vld [vmem:[%s860 + $0x14] sm:$0xf]
    %v865 = vld [vmem:[%s860 + $0x18] sm:$0xff]
    %v866 = vld [vmem:[%s860 + $0x20] sm:$0xf]
    %v867 = vld [vmem:[%s860 + $0x24] sm:$0xff]
    %v868 = vld [vmem:[%s860 + $0x2c] sm:$0xf]
    %v869 = vld [vmem:[%s860 + $0x30] sm:$0xff]
    %v870 = vld [vmem:[%s860 + $0x38] sm:$0xf]
    %v871 = vld [vmem:[%s860 + $0x3c] sm:$0xff]
    %v872 = vld [vmem:[%s860 + $0x44] sm:$0xf]
    %v873 = vld [vmem:[%s860 + $0x48] sm:$0xff]
    %v874 = vld [vmem:[%s860 + $0x50] sm:$0xf]
    %v875 = vld [vmem:[%s860 + $0x54] sm:$0xff]
    %v876 = vld [vmem:[%s860 + $0x5c] sm:$0xf]
    %v877 = vld [vmem:[%s860 + $0x60] sm:$0xff]
    %v878 = vld [vmem:[%s860 + $0x68] sm:$0xf]
    %v879 = vld [vmem:[%s860 + $0x6c] sm:$0xff]
    %v880 = vld [vmem:[%s860 + $0x74] sm:$0xf]
    %v881 = vld [vmem:[%s860 + $0x78] sm:$0xff]
    %v882 = vld [vmem:[%s860 + $0x80] sm:$0xf]
    %v883 = vld [vmem:[%s860 + $0x84] sm:$0xff]
    %v884 = vld [vmem:[%s860 + $0x8c] sm:$0xf]
    %v885 = vld [vmem:[%s860 + $0x90] sm:$0xff]
    %v886 = vld [vmem:[%s860 + $0x98] sm:$0xf]
    %v887 = vld [vmem:[%s860 + $0x9c] sm:$0xff]
    %v888 = vld [vmem:[%s860 + $0xa4] sm:$0xf]
    %v889 = vld [vmem:[%s860 + $0xa8] sm:$0xff]
    %v890 = vld [vmem:[%s860 + $0xb0] sm:$0xf]
    %v891 = vld [vmem:[%s860 + $0xb4] sm:$0xff]
    %v892 = vld [vmem:[%s860 + $0xbc] sm:$0xf]
    %v893 = vld [vmem:[%s860 + $0xc0] sm:$0xff]
    %v894 = vld [vmem:[%s860 + $0xc8] sm:$0xf]
    %v895 = vld [vmem:[%s860 + $0xcc] sm:$0xff]
    %v896 = vld [vmem:[%s860 + $0xd4] sm:$0xf]
    %v897 = vld [vmem:[%s860 + $0xd8] sm:$0xff]
    %v898 = vld [vmem:[%s860 + $0xe0] sm:$0xf]
    %v899 = vld [vmem:[%s860 + $0xe4] sm:$0xff]
    %v900 = vld [vmem:[%s860 + $0xec] sm:$0xf]
    %v901 = vld [vmem:[%s860 + $0xf0] sm:$0xff]
    %v902 = vld [vmem:[%s860 + $0xf8] sm:$0xf]
    %v903 = vld [vmem:[%s860 + $0xfc] sm:$0xff]
    %v904 = vld [vmem:[%s860 + $0x104] sm:$0xf]
    %v905 = vld [vmem:[%s860 + $0x108] sm:$0xff]
    %v906 = vld [vmem:[%s860 + $0x110] sm:$0xf]
    %v907 = vld [vmem:[%s860 + $0x114] sm:$0xff]
    %v908 = vld [vmem:[%s860 + $0x11c] sm:$0xf]
    %v909 = vunpack.c.l.b16 %v849
    %v910 = vunpack.c.h.b16 %v849
    %v911 = vunpack.c.l.b16 %v852
    %v912 = vunpack.c.h.b16 %v852
    %v913 = vunpack.c.l.b16 %v856
    %v914 = vunpack.c.h.b16 %v856
    %v915 = vunpack.c.l.b16 %v859
    %v916 = vunpack.c.h.b16 %v859
    %v917 = vpack.c.b16 %v911, %v909
    %v918 = vpack.c.b16 %v912, %v910
    %v919 = vpack.c.b16 %v915, %v913
    %v920 = vpack.c.b16 %v916, %v914
    %v971 = vunpack.c.l.b16 %v861
    %v972 = vunpack.c.h.b16 %v861
    %v973 = vunpack.c.l.b16 %v862
    %v974 = vunpack.c.l.b16 %v863
    %v975 = vunpack.c.h.b16 %v863
    %v976 = vunpack.c.l.b16 %v864
    %v977 = vunpack.c.l.b16 %v865
    %v978 = vunpack.c.h.b16 %v865
    %v979 = vunpack.c.l.b16 %v866
    %v980 = vunpack.c.l.b16 %v867
    %v981 = vunpack.c.h.b16 %v867
    %v982 = vunpack.c.l.b16 %v868
    %v983 = vunpack.c.l.b16 %v869
    %v984 = vunpack.c.h.b16 %v869
    %v985 = vunpack.c.l.b16 %v870
    %v986 = vunpack.c.l.b16 %v871
    %v987 = vunpack.c.h.b16 %v871
    %v988 = vunpack.c.l.b16 %v872
    %v989 = vunpack.c.l.b16 %v873
    %v990 = vunpack.c.h.b16 %v873
    %v991 = vunpack.c.l.b16 %v874
    %v992 = vunpack.c.l.b16 %v875
    %v993 = vunpack.c.h.b16 %v875
    %v994 = vunpack.c.l.b16 %v876
    %v995 = vunpack.c.l.b16 %v877
    %v996 = vunpack.c.h.b16 %v877
    %v997 = vunpack.c.l.b16 %v878
    %v998 = vunpack.c.l.b16 %v879
    %v999 = vunpack.c.h.b16 %v879
    %v1000 = vunpack.c.l.b16 %v880
    %v1001 = vunpack.c.l.b16 %v881
    %v1002 = vunpack.c.h.b16 %v881
    %v1003 = vunpack.c.l.b16 %v882
    %v1004 = vunpack.c.l.b16 %v883
    %v1005 = vunpack.c.h.b16 %v883
    %v1006 = vunpack.c.l.b16 %v884
    %v1007 = vunpack.c.l.b16 %v885
    %v1008 = vunpack.c.h.b16 %v885
    %v1009 = vunpack.c.l.b16 %v886
    %v1010 = vunpack.c.l.b16 %v887
    %v1011 = vunpack.c.h.b16 %v887
    %v1012 = vunpack.c.l.b16 %v888
    %v1013 = vunpack.c.l.b16 %v889
    %v1014 = vunpack.c.h.b16 %v889
    %v1015 = vunpack.c.l.b16 %v890
    %v1016 = vunpack.c.l.b16 %v891
    %v1017 = vunpack.c.h.b16 %v891
    %v1018 = vunpack.c.l.b16 %v892
    %v1019 = vunpack.c.l.b16 %v893
    %v1020 = vunpack.c.h.b16 %v893
    %v1021 = vunpack.c.l.b16 %v894
    %v1022 = vunpack.c.l.b16 %v895
    %v1023 = vunpack.c.h.b16 %v895
    %v1024 = vunpack.c.l.b16 %v896
    %v1025 = vunpack.c.l.b16 %v897
    %v1026 = vunpack.c.h.b16 %v897
    %v1027 = vunpack.c.l.b16 %v898
    %v1028 = vunpack.c.l.b16 %v899
    %v1029 = vunpack.c.h.b16 %v899
    %v1030 = vunpack.c.l.b16 %v900
    %v1031 = vunpack.c.l.b16 %v901
    %v1032 = vunpack.c.h.b16 %v901
    %v1033 = vunpack.c.l.b16 %v902
    %v1034 = vunpack.c.l.b16 %v903
    %v1035 = vunpack.c.h.b16 %v903
    %v1036 = vunpack.c.l.b16 %v904
    %v1037 = vunpack.c.l.b16 %v905
    %v1038 = vunpack.c.h.b16 %v905
    %v1039 = vunpack.c.l.b16 %v906
    %v1040 = vunpack.c.l.b16 %v907
    %v1041 = vunpack.c.h.b16 %v907
    %v1042 = vunpack.c.l.b16 %v908
    %v1043 = vpack.c.b16 %v974, %v971
    %v1044 = vpack.c.b16 %v975, %v972
    %v1045 = vpack.c.b16 %v976, %v973
    %v1046 = vpack.c.b16 %v980, %v977
    %v1047 = vpack.c.b16 %v981, %v978
    %v1048 = vpack.c.b16 %v982, %v979
    %v1049 = vpack.c.b16 %v986, %v983
    %v1050 = vpack.c.b16 %v987, %v984
    %v1051 = vpack.c.b16 %v988, %v985
    %v1052 = vpack.c.b16 %v992, %v989
    %v1053 = vpack.c.b16 %v993, %v990
    %v1054 = vpack.c.b16 %v994, %v991
    %v1055 = vpack.c.b16 %v998, %v995
    %v1056 = vpack.c.b16 %v999, %v996
    %v1057 = vpack.c.b16 %v1000, %v997
    %v1058 = vpack.c.b16 %v1004, %v1001
    %v1059 = vpack.c.b16 %v1005, %v1002
    %v1060 = vpack.c.b16 %v1006, %v1003
    %v1061 = vpack.c.b16 %v1010, %v1007
    %v1062 = vpack.c.b16 %v1011, %v1008
    %v1063 = vpack.c.b16 %v1012, %v1009
    %v1064 = vpack.c.b16 %v1016, %v1013
    %v1065 = vpack.c.b16 %v1017, %v1014
    %v1066 = vpack.c.b16 %v1018, %v1015
    %v1067 = vpack.c.b16 %v1022, %v1019
    %v1068 = vpack.c.b16 %v1023, %v1020
    %v1069 = vpack.c.b16 %v1024, %v1021
    %v1070 = vpack.c.b16 %v1028, %v1025
    %v1071 = vpack.c.b16 %v1029, %v1026
    %v1072 = vpack.c.b16 %v1030, %v1027
    %v1073 = vpack.c.b16 %v1034, %v1031
    %v1074 = vpack.c.b16 %v1035, %v1032
    %v1075 = vpack.c.b16 %v1036, %v1033
    %v1076 = vpack.c.b16 %v1040, %v1037
    %v1077 = vpack.c.b16 %v1041, %v1038
    %v1078 = vpack.c.b16 %v1042, %v1039
    %v1116 = vsel %vm410, %v918, 0
    %v1119 = vsel %vm410, %v920, 0
    %1121 = vmatprep.subr.bf16.mxu0 %v1044
    %1122 = vmatpush1.bf16.msra.mxu0 %v1043
    %1123 = vmatprep.subr.bf16.mxu0 %v1047
    %1124 = vmatpush1.bf16.msra.mxu0 %v1046
    %1125 = vmatprep.subr.bf16.mxu0 %v1050
    %1126 = vmatpush1.bf16.msra.mxu0 %v1049
    %1127 = vmatprep.subr.bf16.mxu0 %v1053
    %1128 = vmatpush1.bf16.msra.mxu0 %v1052
    %1129 = vmatprep.subr.bf16.mxu0 %v1056
    %1130 = vmatpush1.bf16.msra.mxu0 %v1055
    %1131 = vmatprep.subr.bf16.mxu0 %v1059
    %1132 = vmatpush1.bf16.msra.mxu0 %v1058
    %1133 = vmatprep.subr.bf16.mxu0 %v1062
    %1134 = vmatpush1.bf16.msra.mxu0 %v1061
    %1135 = vmatprep.subr.bf16.mxu0 %v1065
    %1136 = vmatpush1.bf16.msra.mxu0 %v1064
    %1137 = vmatprep.subr.bf16.mxu0 %v1068
    %1138 = vmatpush1.bf16.msra.mxu0 %v1067
    %1139 = vmatprep.subr.bf16.mxu0 %v1071
    %1140 = vmatpush1.bf16.msra.mxu0 %v1070
    %1141 = vmatprep.subr.bf16.mxu0 %v1074
    %1142 = vmatpush1.bf16.msra.mxu0 %v1073
    %1143 = vmatprep.subr.bf16.mxu0 %v1077
    %1144 = vmatpush1.bf16.msra.mxu0 %v1076
    %1145 = vmatprep.subr.bf16.mxu0 0
    %1146 = vmatpush1.bf16.msra.mxu0 0
    %1147 = vmatprep.subr.bf16.mxu0 0
    %1148 = vmatpush1.bf16.msra.mxu0 0
    %1149 = vmatprep.subr.bf16.mxu0 0
    %1150 = vmatpush1.bf16.msra.mxu0 0
    %1151 = vmatprep.subr.bf16.mxu0 0
    %1152 = vmatpush1.bf16.msra.mxu0 0
    %1153 = vmatprep.mubr.bf16.mxu0 %v1116
    %1154 = vmatmul.mubr.bf16.gmra.mrb[0].mxu0 %v917
    %v1155 = vpop.f32.mrb[0].mxu0
    %v1156 = vadd.f32 0.0, %v1155
    %v1157 = vpop.f32.mrb[0].mxu0
    %v1158 = vadd.f32 0.0, %v1157
    %v1159 = vpop.f32.mrb[0].mxu0
    %v1160 = vadd.f32 0.0, %v1159
    %v1161 = vpop.f32.mrb[0].mxu0
    %v1162 = vadd.f32 0.0, %v1161
    %1163 = vmatprep.mubr.bf16.mxu0 %v1119
    %1164 = vmatmul.mubr.bf16.gmra.mrb[0].mxu0 %v919
    %v1165 = vpop.f32.mrb[0].mxu0
    %v1166 = vadd.f32 0.0, %v1165
    %v1167 = vpop.f32.mrb[0].mxu0
    %v1168 = vadd.f32 0.0, %v1167
    %v1169 = vpop.f32.mrb[0].mxu0
    %v1170 = vadd.f32 0.0, %v1169
    %v1171 = vpop.f32.mrb[0].mxu0
    %v1172 = vadd.f32 0.0, %v1171
    %1173 = vdwg.mxu0
    %1174 = vmatprep.subr.bf16.mxu0 0
    %1175 = vmatpush1.bf16.msra.mxu0 %v1045
    %1176 = vmatprep.subr.bf16.mxu0 0
    %1177 = vmatpush1.bf16.msra.mxu0 %v1048
    %1178 = vmatprep.subr.bf16.mxu0 0
    %1179 = vmatpush1.bf16.msra.mxu0 %v1051
    %1180 = vmatprep.subr.bf16.mxu0 0
    %1181 = vmatpush1.bf16.msra.mxu0 %v1054
    %1182 = vmatprep.subr.bf16.mxu0 0
    %1183 = vmatpush1.bf16.msra.mxu0 %v1057
    %1184 = vmatprep.subr.bf16.mxu0 0
    %1185 = vmatpush1.bf16.msra.mxu0 %v1060
    %1186 = vmatprep.subr.bf16.mxu0 0
    %1187 = vmatpush1.bf16.msra.mxu0 %v1063
    %1188 = vmatprep.subr.bf16.mxu0 0
    %1189 = vmatpush1.bf16.msra.mxu0 %v1066
    %1190 = vmatprep.subr.bf16.mxu0 0
    %1191 = vmatpush1.bf16.msra.mxu0 %v1069
    %1192 = vmatprep.subr.bf16.mxu0 0
    %1193 = vmatpush1.bf16.msra.mxu0 %v1072
    %1194 = vmatprep.subr.bf16.mxu0 0
    %1195 = vmatpush1.bf16.msra.mxu0 %v1075
    %1196 = vmatprep.subr.bf16.mxu0 0
    %1197 = vmatpush1.bf16.msra.mxu0 %v1078
    %1198 = vmatprep.subr.bf16.mxu0 0
    %1199 = vmatpush1.bf16.msra.mxu0 0
    %1200 = vmatprep.subr.bf16.mxu0 0
    %1201 = vmatpush1.bf16.msra.mxu0 0
    %1202 = vmatprep.subr.bf16.mxu0 0
    %1203 = vmatpush1.bf16.msra.mxu0 0
    %1204 = vmatprep.subr.bf16.mxu0 0
    %1205 = vmatpush1.bf16.msra.mxu0 0
    %1206 = vmatprep.mubr.bf16.mxu0 %v1116
    %1207 = vmatmul.mubr.bf16.gmra.mrb[0].mxu0 %v917
    %v1208 = vpop.f32.mrb[0].mxu0
    %v1209 = vadd.f32 0.0, %v1208
    %v1210 = vpop.f32.mrb[0].mxu0
    %v1211 = vpop.f32.mrb[0].mxu0
    %v1212 = vadd.f32 0.0, %v1211
    %v1213 = vpop.f32.mrb[0].mxu0
    %1214 = vmatprep.mubr.bf16.mxu0 %v1119
    %1215 = vmatmul.mubr.bf16.gmra.mrb[0].mxu0 %v919
    %v1216 = vpop.f32.mrb[0].mxu0
    %v1217 = vadd.f32 0.0, %v1216
    %v1218 = vpop.f32.mrb[0].mxu0
    %v1219 = vpop.f32.mrb[0].mxu0
    %v1220 = vadd.f32 0.0, %v1219
    %v1221 = vpop.f32.mrb[0].mxu0
    %1222 = vdwg.mxu0
    %v1223 = vadd.f32 %v770, %v1156
    %v1224 = vadd.f32 %v772, %v1158
    %v1225 = vadd.f32 %v823, %v1209
    %v1226 = vadd.f32 %v774, %v1160
    %v1227 = vadd.f32 %v776, %v1162
    %v1228 = vadd.f32 %v826, %v1212
    %v1229 = vadd.f32 %v780, %v1166
    %v1230 = vadd.f32 %v782, %v1168
    %v1231 = vadd.f32 %v831, %v1217
    %v1232 = vadd.f32 %v784, %v1170
    %v1233 = vadd.f32 %v786, %v1172
    %v1234 = vadd.f32 %v834, %v1220
    %v1235 = vld [vmem:[%s4] sm:$0x7]
    %v1237 = vlaneseq
    %v1238 = vshrl.u32 %v1237, 7
    %v1239 = vsub.s32 0, %v1238
    %v1240 = vrot.slane %v1235, %v1239
    %v1241 = vlaneseq
    %v1242 = vshrl.u32 %v1241, 7
    %v1243 = vsub.s32 1, %v1242
    %v1244 = vrot.slane %v1235, %v1243
    %v1245 = vlaneseq
    %v1246 = vshrl.u32 %v1245, 7
    %v1247 = vsub.s32 2, %v1246
    %v1248 = vrot.slane %v1235, %v1247
    %v1252 = vadd.f32 %v1223, %v1240
    %v1253 = vadd.f32 %v1224, %v1244
    %v1254 = vadd.f32 %v1225, %v1248
    %v1255 = vadd.f32 %v1226, %v1240
    %v1256 = vadd.f32 %v1227, %v1244
    %v1257 = vadd.f32 %v1228, %v1248
    %v1258 = vadd.f32 %v1229, %v1240
    %v1259 = vadd.f32 %v1230, %v1244
    %v1260 = vadd.f32 %v1231, %v1248
    %v1261 = vadd.f32 %v1232, %v1240
    %v1262 = vadd.f32 %v1233, %v1244
    %v1263 = vadd.f32 %v1234, %v1248
    %v1264 = vxor.u32 %v1252, 2147483648
    %v1265 = vxor.u32 %v1255, 2147483648
    %v1266 = vxor.u32 %v1258, 2147483648
    %v1267 = vxor.u32 %v1261, 2147483648
    %v1268 = vmul.f32 %v1264, 1.442695
    %v1269 = vpow.pop %v1268
    %v1270 = vmul.f32 %v1265, 1.442695
    %v1271 = vpow.pop %v1270
    %v1272 = vmul.f32 %v1266, 1.442695
    %v1273 = vpow.pop %v1272
    %v1274 = vmul.f32 %v1267, 1.442695
    %v1275 = vpow.pop %v1274
    %v1276 = vadd.f32 %v1269, 1.0
    %v1277 = vadd.f32 %v1271, 1.0
    %v1278 = vadd.f32 %v1273, 1.0
    %v1279 = vadd.f32 %v1275, 1.0
    %v1280 = vrcp.pop %v1276
    %v1281 = vmul.f32 1.0, %v1280
    %v1282 = vrcp.pop %v1277
    %v1283 = vmul.f32 1.0, %v1282
    %v1284 = vrcp.pop %v1278
    %v1285 = vmul.f32 1.0, %v1284
    %v1286 = vrcp.pop %v1279
    %v1287 = vmul.f32 1.0, %v1286
    %v1288 = vxor.u32 %v1253, 2147483648
    %v1289 = vxor.u32 %v1256, 2147483648
    %v1290 = vxor.u32 %v1259, 2147483648
    %v1291 = vxor.u32 %v1262, 2147483648
    %v1292 = vmul.f32 %v1288, 1.442695
    %v1293 = vpow.pop %v1292
    %v1294 = vmul.f32 %v1289, 1.442695
    %v1295 = vpow.pop %v1294
    %v1296 = vmul.f32 %v1290, 1.442695
    %v1297 = vpow.pop %v1296
    %v1298 = vmul.f32 %v1291, 1.442695
    %v1299 = vpow.pop %v1298
    %v1300 = vadd.f32 %v1293, 1.0
    %v1301 = vadd.f32 %v1295, 1.0
    %v1302 = vadd.f32 %v1297, 1.0
    %v1303 = vadd.f32 %v1299, 1.0
    %v1304 = vrcp.pop %v1300
    %v1305 = vmul.f32 1.0, %v1304
    %v1306 = vrcp.pop %v1301
    %v1307 = vmul.f32 1.0, %v1306
    %v1308 = vrcp.pop %v1302
    %v1309 = vmul.f32 1.0, %v1308
    %v1310 = vrcp.pop %v1303
    %v1311 = vmul.f32 1.0, %v1310
    %v1312 = vld [vmem:[%s1] sm:$0xff]
    %v1313 = vld [vmem:[%s1 + $0x8] sm:$0xff]
    %v1314 = vld [vmem:[%s1 + $0x10] sm:$0xff]
    %v1315 = vld [vmem:[%s1 + $0x18] sm:$0xff]
    %v1316 = vmul.f32 %v1281, %v1312
    %v1317 = vmul.f32 %v1283, %v1313
    %v1318 = vmul.f32 %v1285, %v1314
    %v1319 = vmul.f32 %v1287, %v1315
    %vm1320 = vcmask 1040384
    %vm1321 = vsmask.f32 256
    %vm1322 = vmand %vm1320, %vm1321
    %v1323 = vld [vmem:[#allocation2] sm:$0x1]
    %v1324 = vsel %vm1322, 0, %v1323
    %1325 = vst [vmem:[#allocation2] sm:$0x1] %v1324
    %v1326 = vld [vmem:[#allocation2 + $0xc] sm:$0x1]
    %v1327 = vsel %vm1322, 0, %v1326
    %1328 = vst [vmem:[#allocation2 + $0xc] sm:$0x1] %v1327
    %vm1329 = vsmask.f32 7938
    %vm1330 = vmand %vm1320, %vm1329
    %v1331 = vld [vmem:[#allocation2 + $0x8] sm:$0x1]
    %v1332 = vsel %vm1330, 0, %v1331
    %1333 = vst [vmem:[#allocation2 + $0x8] sm:$0x1] %v1332
    %v1334 = vld [vmem:[#allocation2 + $0x14] sm:$0x1]
    %v1335 = vsel %vm1330, 0, %v1334
    %1336 = vst [vmem:[#allocation2 + $0x14] sm:$0x1] %v1335
    %v1337 = vpack.c.bf16 %v1317, %v1316
    %v1338 = vpack.c.bf16 %v1319, %v1318
    %v1341 = vunpack.c.l.b16 %v1337
    %v1342 = vunpack.c.h.b16 %v1337
    %v1343 = vunpack.c.l.b16 %v1338
    %v1344 = vunpack.c.h.b16 %v1338
    %v1345 = vpack.c.b16 %v1341, %v1341
    %v1346 = vpack.c.b16 %v1342, %v1342
    %v1347 = vpack.c.b16 %v1343, %v1343
    %v1348 = vpack.c.b16 %v1344, %v1344
    %vm1349 = vsmask.f32 4368
    %vm1350 = vmor %vm1321, %vm1349
    %v1352 = vshrl.u32 %v1345, 16
    %v1354 = vrot.slane %v1352, 7
    %v1355 = vshll.u32 %v1345, 16
    %v1357 = vor.u32 %v1354, %v1355
    %v1358 = vrot.slane %v1354, 4
    %v1360 = vshrl.u32 %v1346, 16
    %v1362 = vrot.slane %v1360, 7
    %v1363 = vshll.u32 %v1346, 16
    %v1365 = vor.u32 %v1362, %v1363
    %v1366 = vsel %vm1350, %v1358, %v1365
    %v1367 = vrot.slane %v1362, 4
    %v1369 = vshrl.u32 %v1347, 16
    %v1371 = vrot.slane %v1369, 7
    %v1372 = vshll.u32 %v1347, 16
    %v1374 = vor.u32 %v1371, %v1372
    %v1375 = vrot.slane %v1371, 4
    %v1377 = vshrl.u32 %v1348, 16
    %v1379 = vrot.slane %v1377, 7
    %v1380 = vshll.u32 %v1348, 16
    %v1382 = vor.u32 %v1379, %v1380
    %v1383 = vsel %vm1350, %v1375, %v1382
    %v1384 = vrot.slane %v1379, 4
    %vm1391 = vcmask 1043456
    %vm1392 = vmand %vm1391, %vm1329
    %v1393 = vld [vmem:[#allocation2] sm:$0xf]
    %v1394 = vsel %vm1392, %v1357, %v1393
    %1395 = vst [vmem:[#allocation2] sm:$0xf] %v1394
    %1396 = vst [vmem:[#allocation2 + $0x4] sm:$0xf] %v1366
    %v1397 = vld [vmem:[#allocation2 + $0x8] sm:$0x1]
    %v1398 = vsel %vm1322, %v1367, %v1397
    %1399 = vst [vmem:[#allocation2 + $0x8] sm:$0x1] %v1398
    %v1400 = vld [vmem:[#allocation2 + $0xc] sm:$0xf]
    %v1401 = vsel %vm1392, %v1374, %v1400
    %1402 = vst [vmem:[#allocation2 + $0xc] sm:$0xf] %v1401
    %1403 = vst [vmem:[#allocation2 + $0x10] sm:$0xf] %v1383
    %v1404 = vld [vmem:[#allocation2 + $0x14] sm:$0x1]
    %v1405 = vsel %vm1322, %v1384, %v1404
    %1406 = vst [vmem:[#allocation2 + $0x14] sm:$0x1] %v1405
    %v1407 = vld [vmem:[#allocation2] sm:$0xf]
    %v1408 = vld [vmem:[#allocation2 + $0x4] sm:$0xf]
    %v1409 = vld [vmem:[#allocation2 + $0xc] sm:$0xf]
    %v1410 = vld [vmem:[#allocation2 + $0x10] sm:$0xf]
    %v1411 = vld [vmem:[#allocation6] sm:$0xf]
    %v1412 = vld [vmem:[#allocation6 + $0x4] sm:$0xf]
    %v1413 = vld [vmem:[#allocation6 + $0x8] sm:$0xf]
    %v1414 = vld [vmem:[#allocation6 + $0xc] sm:$0xf]
    %v1415 = vld [vmem:[#allocation6 + $0x10] sm:$0xf]
    %v1416 = vld [vmem:[#allocation6 + $0x14] sm:$0xf]
    %v1417 = vld [vmem:[#allocation6 + $0x18] sm:$0xf]
    %v1418 = vld [vmem:[#allocation6 + $0x1c] sm:$0xf]
    %v1419 = vld [vmem:[#allocation6 + $0x20] sm:$0xf]
    %v1420 = vld [vmem:[#allocation6 + $0x24] sm:$0xf]
    %v1421 = vld [vmem:[#allocation6 + $0x28] sm:$0xf]
    %v1422 = vld [vmem:[#allocation6 + $0x2c] sm:$0xf]
    %v1423 = vld [vmem:[#allocation6 + $0x30] sm:$0xf]
    %v1424 = vld [vmem:[#allocation6 + $0x34] sm:$0xf]
    %v1425 = vld [vmem:[#allocation6 + $0x38] sm:$0xf]
    %v1426 = vld [vmem:[#allocation6 + $0x3c] sm:$0xf]
    %v1427 = vld [vmem:[#allocation2 + $0x8] sm:$0x1]
    %v1428 = vld [vmem:[#allocation2 + $0x14] sm:$0x1]
    %v1430 = vshrl.u32 %v1407, 16
    %v1432 = vrot.slane %v1430, 4
    %v1433 = vshll.u32 %v1407, 16
    %v1435 = vrot.slane %v1433, 5
    %v1436 = vor.u32 %v1432, %v1435
    %v1437 = vrot.slane %v1436, 4
    %v1439 = vshll.u32 %v1408, 16
    %v1441 = vrot.slane %v1439, 5
    %v1442 = vsel %vm106, %v1437, %v1441
    %v1443 = vshrl.u32 %v1408, 16
    %v1445 = vrot.slane %v1443, 4
    %v1446 = vor.u32 %v1445, %v1441
    %v1447 = vrot.slane %v1446, 4
    %v1449 = vshll.u32 %v1427, 16
    %v1451 = vrot.slane %v1449, 5
    %v1452 = vsel %vm106, %v1447, %v1451
    %v1454 = vshrl.u32 %v1409, 16
    %v1456 = vrot.slane %v1454, 4
    %v1457 = vshll.u32 %v1409, 16
    %v1459 = vrot.slane %v1457, 5
    %v1460 = vor.u32 %v1456, %v1459
    %v1461 = vrot.slane %v1460, 4
    %v1463 = vshll.u32 %v1410, 16
    %v1465 = vrot.slane %v1463, 5
    %v1466 = vsel %vm106, %v1461, %v1465
    %v1467 = vshrl.u32 %v1410, 16
    %v1469 = vrot.slane %v1467, 4
    %v1470 = vor.u32 %v1469, %v1465
    %v1471 = vrot.slane %v1470, 4
    %v1473 = vshll.u32 %v1428, 16
    %v1475 = vrot.slane %v1473, 5
    %v1476 = vsel %vm106, %v1471, %v1475
    %s1477 = scalar_lea.vmem [#allocation6], 64
    %v1478 = vld [vmem:[%s1477] sm:$0xf]
    %v1479 = vld [vmem:[%s1477 + $0x4] sm:$0xf]
    %v1480 = vld [vmem:[%s1477 + $0x8] sm:$0xf]
    %v1481 = vld [vmem:[%s1477 + $0xc] sm:$0xf]
    %v1482 = vld [vmem:[%s1477 + $0x10] sm:$0xf]
    %v1483 = vld [vmem:[%s1477 + $0x14] sm:$0xf]
    %v1484 = vld [vmem:[%s1477 + $0x18] sm:$0xf]
    %v1485 = vld [vmem:[%s1477 + $0x1c] sm:$0xf]
    %v1486 = vld [vmem:[%s1477 + $0x20] sm:$0xf]
    %v1487 = vld [vmem:[%s1477 + $0x24] sm:$0xf]
    %v1488 = vld [vmem:[%s1477 + $0x28] sm:$0xf]
    %v1489 = vld [vmem:[%s1477 + $0x2c] sm:$0xf]
    %v1490 = vld [vmem:[%s1477 + $0x30] sm:$0xf]
    %v1491 = vld [vmem:[%s1477 + $0x34] sm:$0xf]
    %v1492 = vld [vmem:[%s1477 + $0x38] sm:$0xf]
    %v1493 = vld [vmem:[%s1477 + $0x3c] sm:$0xf]
    %v1494 = vunpack.c.l.b16 %v1442
    %v1495 = vunpack.c.l.b16 %v1452
    %v1496 = vunpack.c.l.b16 %v1466
    %v1497 = vunpack.c.l.b16 %v1476
    %v1498 = vpack.c.b16 %v1495, %v1494
    %v1499 = vpack.c.b16 %v1497, %v1496
    %v1518 = vunpack.c.l.b16 %v1478
    %v1519 = vunpack.c.l.b16 %v1479
    %v1520 = vunpack.c.l.b16 %v1480
    %v1521 = vunpack.c.l.b16 %v1481
    %v1522 = vunpack.c.l.b16 %v1482
    %v1523 = vunpack.c.l.b16 %v1483
    %v1524 = vunpack.c.l.b16 %v1484
    %v1525 = vunpack.c.l.b16 %v1485
    %v1526 = vunpack.c.l.b16 %v1486
    %v1527 = vunpack.c.l.b16 %v1487
    %v1528 = vunpack.c.l.b16 %v1488
    %v1529 = vunpack.c.l.b16 %v1489
    %v1530 = vunpack.c.l.b16 %v1490
    %v1531 = vunpack.c.l.b16 %v1491
    %v1532 = vunpack.c.l.b16 %v1492
    %v1533 = vunpack.c.l.b16 %v1493
    %v1534 = vpack.c.b16 %v1519, %v1518
    %v1535 = vpack.c.b16 %v1521, %v1520
    %v1536 = vpack.c.b16 %v1523, %v1522
    %v1537 = vpack.c.b16 %v1525, %v1524
    %v1538 = vpack.c.b16 %v1527, %v1526
    %v1539 = vpack.c.b16 %v1529, %v1528
    %v1540 = vpack.c.b16 %v1531, %v1530
    %v1541 = vpack.c.b16 %v1533, %v1532
    %1550 = vmatprep.subr.bf16.mxu0 0
    %1551 = vmatpush1.bf16.msra.mxu0 %v1534
    %1552 = vmatprep.subr.bf16.mxu0 0
    %1553 = vmatpush1.bf16.msra.mxu0 %v1535
    %1554 = vmatprep.subr.bf16.mxu0 0
    %1555 = vmatpush1.bf16.msra.mxu0 %v1536
    %1556 = vmatprep.subr.bf16.mxu0 0
    %1557 = vmatpush1.bf16.msra.mxu0 %v1537
    %1558 = vmatprep.subr.bf16.mxu0 0
    %1559 = vmatpush1.bf16.msra.mxu0 %v1538
    %1560 = vmatprep.subr.bf16.mxu0 0
    %1561 = vmatpush1.bf16.msra.mxu0 %v1539
    %1562 = vmatprep.subr.bf16.mxu0 0
    %1563 = vmatpush1.bf16.msra.mxu0 %v1540
    %1564 = vmatprep.subr.bf16.mxu0 0
    %1565 = vmatpush1.bf16.msra.mxu0 %v1541
    %1566 = vmatprep.subr.bf16.mxu0 0
    %1567 = vmatpush1.bf16.msra.mxu0 0
    %1568 = vmatprep.subr.bf16.mxu0 0
    %1569 = vmatpush1.bf16.msra.mxu0 0
    %1570 = vmatprep.subr.bf16.mxu0 0
    %1571 = vmatpush1.bf16.msra.mxu0 0
    %1572 = vmatprep.subr.bf16.mxu0 0
    %1573 = vmatpush1.bf16.msra.mxu0 0
    %1574 = vmatprep.subr.bf16.mxu0 0
    %1575 = vmatpush1.bf16.msra.mxu0 0
    %1576 = vmatprep.subr.bf16.mxu0 0
    %1577 = vmatpush1.bf16.msra.mxu0 0
    %1578 = vmatprep.subr.bf16.mxu0 0
    %1579 = vmatpush1.bf16.msra.mxu0 0
    %1580 = vmatprep.subr.bf16.mxu0 0
    %1581 = vmatpush1.bf16.msra.mxu0 0
    %1582 = vmatprep.mubr.bf16.mxu0 0
    %1583 = vmatmul.mubr.bf16.gmra.mrb[0].mxu0 %v1498
    %v1584 = vpop.f32.mrb[0].mxu0
    %v1585 = vadd.f32 0.0, %v1584
    %v1586 = vpop.f32.mrb[0].mxu0
    %v1587 = vpop.f32.mrb[0].mxu0
    %v1588 = vadd.f32 0.0, %v1587
    %v1589 = vpop.f32.mrb[0].mxu0
    %1590 = vmatprep.mubr.bf16.mxu0 0
    %1591 = vmatmul.mubr.bf16.gmra.mrb[0].mxu0 %v1499
    %v1592 = vpop.f32.mrb[0].mxu0
    %v1593 = vadd.f32 0.0, %v1592
    %v1594 = vpop.f32.mrb[0].mxu0
    %v1595 = vpop.f32.mrb[0].mxu0
    %v1596 = vadd.f32 0.0, %v1595
    %v1597 = vpop.f32.mrb[0].mxu0
    %1598 = vdwg.mxu0
    %v1603 = vunpack.c.l.b16 %v1407
    %v1604 = vunpack.c.l.b16 %v1408
    %v1605 = vunpack.c.l.b16 %v1409
    %v1606 = vunpack.c.l.b16 %v1410
    %v1607 = vpack.c.b16 %v1604, %v1603
    %v1608 = vpack.c.b16 %v1606, %v1605
    %v1627 = vunpack.c.l.b16 %v1411
    %v1628 = vunpack.c.l.b16 %v1412
    %v1629 = vunpack.c.l.b16 %v1413
    %v1630 = vunpack.c.l.b16 %v1414
    %v1631 = vunpack.c.l.b16 %v1415
    %v1632 = vunpack.c.l.b16 %v1416
    %v1633 = vunpack.c.l.b16 %v1417
    %v1634 = vunpack.c.l.b16 %v1418
    %v1635 = vunpack.c.l.b16 %v1419
    %v1636 = vunpack.c.l.b16 %v1420
    %v1637 = vunpack.c.l.b16 %v1421
    %v1638 = vunpack.c.l.b16 %v1422
    %v1639 = vunpack.c.l.b16 %v1423
    %v1640 = vunpack.c.l.b16 %v1424
    %v1641 = vunpack.c.l.b16 %v1425
    %v1642 = vunpack.c.l.b16 %v1426
    %v1643 = vpack.c.b16 %v1628, %v1627
    %v1644 = vpack.c.b16 %v1630, %v1629
    %v1645 = vpack.c.b16 %v1632, %v1631
    %v1646 = vpack.c.b16 %v1634, %v1633
    %v1647 = vpack.c.b16 %v1636, %v1635
    %v1648 = vpack.c.b16 %v1638, %v1637
    %v1649 = vpack.c.b16 %v1640, %v1639
    %v1650 = vpack.c.b16 %v1642, %v1641
    %1659 = vmatprep.subr.bf16.mxu0 0
    %1660 = vmatpush1.bf16.msra.mxu0 %v1643
    %1661 = vmatprep.subr.bf16.mxu0 0
    %1662 = vmatpush1.bf16.msra.mxu0 %v1644
    %1663 = vmatprep.subr.bf16.mxu0 0
    %1664 = vmatpush1.bf16.msra.mxu0 %v1645
    %1665 = vmatprep.subr.bf16.mxu0 0
    %1666 = vmatpush1.bf16.msra.mxu0 %v1646
    %1667 = vmatprep.subr.bf16.mxu0 0
    %1668 = vmatpush1.bf16.msra.mxu0 %v1647
    %1669 = vmatprep.subr.bf16.mxu0 0
    %1670 = vmatpush1.bf16.msra.mxu0 %v1648
    %1671 = vmatprep.subr.bf16.mxu0 0
    %1672 = vmatpush1.bf16.msra.mxu0 %v1649
    %1673 = vmatprep.subr.bf16.mxu0 0
    %1674 = vmatpush1.bf16.msra.mxu0 %v1650
    %1675 = vmatprep.subr.bf16.mxu0 0
    %1676 = vmatpush1.bf16.msra.mxu0 0
    %1677 = vmatprep.subr.bf16.mxu0 0
    %1678 = vmatpush1.bf16.msra.mxu0 0
    %1679 = vmatprep.subr.bf16.mxu0 0
    %1680 = vmatpush1.bf16.msra.mxu0 0
    %1681 = vmatprep.subr.bf16.mxu0 0
    %1682 = vmatpush1.bf16.msra.mxu0 0
    %1683 = vmatprep.subr.bf16.mxu0 0
    %1684 = vmatpush1.bf16.msra.mxu0 0
    %1685 = vmatprep.subr.bf16.mxu0 0
    %1686 = vmatpush1.bf16.msra.mxu0 0
    %1687 = vmatprep.subr.bf16.mxu0 0
    %1688 = vmatpush1.bf16.msra.mxu0 0
    %1689 = vmatprep.subr.bf16.mxu0 0
    %1690 = vmatpush1.bf16.msra.mxu0 0
    %1691 = vmatprep.mubr.bf16.mxu0 0
    %1692 = vmatmul.mubr.bf16.gmra.mrb[0].mxu0 %v1607
    %v1693 = vpop.f32.mrb[0].mxu0
    %v1694 = vadd.f32 %v1585, %v1693
    %v1695 = vpop.f32.mrb[0].mxu0
    %v1696 = vpop.f32.mrb[0].mxu0
    %v1697 = vadd.f32 %v1588, %v1696
    %v1698 = vpop.f32.mrb[0].mxu0
    %1699 = vmatprep.mubr.bf16.mxu0 0
    %1700 = vmatmul.mubr.bf16.gmra.mrb[0].mxu0 %v1608
    %v1701 = vpop.f32.mrb[0].mxu0
    %v1702 = vadd.f32 %v1593, %v1701
    %v1703 = vpop.f32.mrb[0].mxu0
    %v1704 = vpop.f32.mrb[0].mxu0
    %v1705 = vadd.f32 %v1596, %v1704
    %v1706 = vpop.f32.mrb[0].mxu0
    %1707 = vdwg.mxu0
    %v1708 = vld [vmem:[#allocation2] sm:$0xe]
    %v1709 = vld [vmem:[#allocation2 + $0xc] sm:$0xe]
    %v1714 = vrot.slane %v1708, 5
    %v1715 = vrot.slane %v1714, 4
    %v1716 = vrot.slane %v1408, 5
    %v1717 = vsel %vm845, %v1715, %v1716
    %v1718 = vrot.slane %v1716, 4
    %v1719 = vrot.slane %v1427, 5
    %v1720 = vsel %vm845, %v1718, %v1719
    %v1721 = vrot.slane %v1709, 5
    %v1722 = vrot.slane %v1721, 4
    %v1723 = vrot.slane %v1410, 5
    %v1724 = vsel %vm845, %v1722, %v1723
    %v1725 = vrot.slane %v1723, 4
    %v1726 = vrot.slane %v1428, 5
    %v1727 = vsel %vm845, %v1725, %v1726
    %s1728 = scalar_lea.vmem [#allocation6], 128
    %v1729 = vld [vmem:[%s1728] sm:$0xf]
    %v1730 = vld [vmem:[%s1728 + $0x4] sm:$0xf]
    %v1731 = vld [vmem:[%s1728 + $0x8] sm:$0xf]
    %v1732 = vld [vmem:[%s1728 + $0xc] sm:$0xf]
    %v1733 = vld [vmem:[%s1728 + $0x10] sm:$0xf]
    %v1734 = vld [vmem:[%s1728 + $0x14] sm:$0xf]
    %v1735 = vld [vmem:[%s1728 + $0x18] sm:$0xf]
    %v1736 = vld [vmem:[%s1728 + $0x1c] sm:$0xf]
    %v1737 = vld [vmem:[%s1728 + $0x20] sm:$0xf]
    %v1738 = vld [vmem:[%s1728 + $0x24] sm:$0xf]
    %v1739 = vld [vmem:[%s1728 + $0x28] sm:$0xf]
    %v1740 = vld [vmem:[%s1728 + $0x2c] sm:$0xf]
    %v1741 = vld [vmem:[%s1728 + $0x30] sm:$0xf]
    %v1742 = vld [vmem:[%s1728 + $0x34] sm:$0xf]
    %v1743 = vld [vmem:[%s1728 + $0x38] sm:$0xf]
    %v1744 = vld [vmem:[%s1728 + $0x3c] sm:$0xf]
    %v1745 = vunpack.c.l.b16 %v1717
    %v1746 = vunpack.c.l.b16 %v1720
    %v1747 = vunpack.c.l.b16 %v1724
    %v1748 = vunpack.c.l.b16 %v1727
    %v1749 = vpack.c.b16 %v1746, %v1745
    %v1750 = vpack.c.b16 %v1748, %v1747
    %v1769 = vunpack.c.l.b16 %v1729
    %v1770 = vunpack.c.l.b16 %v1730
    %v1771 = vunpack.c.l.b16 %v1731
    %v1772 = vunpack.c.l.b16 %v1732
    %v1773 = vunpack.c.l.b16 %v1733
    %v1774 = vunpack.c.l.b16 %v1734
    %v1775 = vunpack.c.l.b16 %v1735
    %v1776 = vunpack.c.l.b16 %v1736
    %v1777 = vunpack.c.l.b16 %v1737
    %v1778 = vunpack.c.l.b16 %v1738
    %v1779 = vunpack.c.l.b16 %v1739
    %v1780 = vunpack.c.l.b16 %v1740
    %v1781 = vunpack.c.l.b16 %v1741
    %v1782 = vunpack.c.l.b16 %v1742
    %v1783 = vunpack.c.l.b16 %v1743
    %v1784 = vunpack.c.l.b16 %v1744
    %v1785 = vpack.c.b16 %v1770, %v1769
    %v1786 = vpack.c.b16 %v1772, %v1771
    %v1787 = vpack.c.b16 %v1774, %v1773
    %v1788 = vpack.c.b16 %v1776, %v1775
    %v1789 = vpack.c.b16 %v1778, %v1777
    %v1790 = vpack.c.b16 %v1780, %v1779
    %v1791 = vpack.c.b16 %v1782, %v1781
    %v1792 = vpack.c.b16 %v1784, %v1783
    %1801 = vmatprep.subr.bf16.mxu0 0
    %1802 = vmatpush1.bf16.msra.mxu0 %v1785
    %1803 = vmatprep.subr.bf16.mxu0 0
    %1804 = vmatpush1.bf16.msra.mxu0 %v1786
    %1805 = vmatprep.subr.bf16.mxu0 0
    %1806 = vmatpush1.bf16.msra.mxu0 %v1787
    %1807 = vmatprep.subr.bf16.mxu0 0
    %1808 = vmatpush1.bf16.msra.mxu0 %v1788
    %1809 = vmatprep.subr.bf16.mxu0 0
    %1810 = vmatpush1.bf16.msra.mxu0 %v1789
    %1811 = vmatprep.subr.bf16.mxu0 0
    %1812 = vmatpush1.bf16.msra.mxu0 %v1790
    %1813 = vmatprep.subr.bf16.mxu0 0
    %1814 = vmatpush1.bf16.msra.mxu0 %v1791
    %1815 = vmatprep.subr.bf16.mxu0 0
    %1816 = vmatpush1.bf16.msra.mxu0 %v1792
    %1817 = vmatprep.subr.bf16.mxu0 0
    %1818 = vmatpush1.bf16.msra.mxu0 0
    %1819 = vmatprep.subr.bf16.mxu0 0
    %1820 = vmatpush1.bf16.msra.mxu0 0
    %1821 = vmatprep.subr.bf16.mxu0 0
    %1822 = vmatpush1.bf16.msra.mxu0 0
    %1823 = vmatprep.subr.bf16.mxu0 0
    %1824 = vmatpush1.bf16.msra.mxu0 0
    %1825 = vmatprep.subr.bf16.mxu0 0
    %1826 = vmatpush1.bf16.msra.mxu0 0
    %1827 = vmatprep.subr.bf16.mxu0 0
    %1828 = vmatpush1.bf16.msra.mxu0 0
    %1829 = vmatprep.subr.bf16.mxu0 0
    %1830 = vmatpush1.bf16.msra.mxu0 0
    %1831 = vmatprep.subr.bf16.mxu0 0
    %1832 = vmatpush1.bf16.msra.mxu0 0
    %1833 = vmatprep.mubr.bf16.mxu0 0
    %1834 = vmatmul.mubr.bf16.gmra.mrb[0].mxu0 %v1749
    %v1835 = vpop.f32.mrb[0].mxu0
    %v1836 = vadd.f32 0.0, %v1835
    %v1837 = vpop.f32.mrb[0].mxu0
    %v1838 = vpop.f32.mrb[0].mxu0
    %v1839 = vadd.f32 0.0, %v1838
    %v1840 = vpop.f32.mrb[0].mxu0
    %1841 = vmatprep.mubr.bf16.mxu0 0
    %1842 = vmatmul.mubr.bf16.gmra.mrb[0].mxu0 %v1750
    %v1843 = vpop.f32.mrb[0].mxu0
    %v1844 = vadd.f32 0.0, %v1843
    %v1845 = vpop.f32.mrb[0].mxu0
    %v1846 = vpop.f32.mrb[0].mxu0
    %v1847 = vadd.f32 0.0, %v1846
    %v1848 = vpop.f32.mrb[0].mxu0
    %1849 = vdwg.mxu0
    %v1850 = vadd.f32 %v1694, %v1836
    %v1851 = vadd.f32 %v1697, %v1839
    %v1852 = vadd.f32 %v1702, %v1844
    %v1853 = vadd.f32 %v1705, %v1847
    %v1854 = vadd.f32 %v1254, %v1850
    %v1855 = vadd.f32 %v1257, %v1851
    %v1856 = vadd.f32 %v1260, %v1852
    %v1857 = vadd.f32 %v1263, %v1853
    %v1858 = vmax.f32 %v1854, 0.0
    %v1859 = vmax.f32 %v1855, 0.0
    %v1860 = vmax.f32 %v1856, 0.0
    %v1861 = vmax.f32 %v1857, 0.0
    %v1862 = vmul.f32 %v1305, %v1312
    %v1863 = vmul.f32 %v1307, %v1313
    %v1864 = vmul.f32 %v1309, %v1314
    %v1865 = vmul.f32 %v1311, %v1315
    %v1866 = vsub.f32 1.0, %v1305
    %v1867 = vsub.f32 1.0, %v1307
    %v1868 = vsub.f32 1.0, %v1309
    %v1869 = vsub.f32 1.0, %v1311
    %v1870 = vmul.f32 %v1866, %v1858
    %v1871 = vmul.f32 %v1867, %v1859
    %v1872 = vmul.f32 %v1868, %v1860
    %v1873 = vmul.f32 %v1869, %v1861
    %v1874 = vadd.f32 %v1862, %v1870
    %v1875 = vadd.f32 %v1863, %v1871
    %v1876 = vadd.f32 %v1864, %v1872
    %v1877 = vadd.f32 %v1865, %v1873
    %1878 = vst [vmem:[#allocation8] sm:$0xff] %v1874
    %1879 = vst [vmem:[#allocation8 + $0x8] sm:$0xff] %v1875
    %1880 = vst [vmem:[#allocation8 + $0x10] sm:$0xff] %v1876
    %1881 = vst [vmem:[#allocation8 + $0x18] sm:$0xff] %v1877
    // Predicated region
    $region30: #{tpu_custom_call.1} parent=1 // pred_check
      _
    $region31: #{tpu_custom_call.1} parent=1 // pred_check_branch
      %1883 = sbr.rel (0) target = $region33
    $region32: #{tpu_custom_call.1} parent=1 // pred_region
      %s1885 = ssub.s32 512, 512
      %1886 = vsyncadd [#allocation5], %s1885
      %s1887 = sshll.u32 [#allocation8], 4
      %s1888 = int_to_ptr.vmem [resolvable:$true] %s1887
      %1893 = dma.vmem_to_hbm [thread:$0]  %s1888, 512, %s5, [#allocation5], 128, 128, 8
    $region33: #{tpu_custom_call.1} parent=1 // pred_fallthru
      _
    // Predicated region
    $region34: #{tpu_custom_call.1} parent=1 // pred_check
      _
    $region35: #{tpu_custom_call.1} parent=1 // pred_check_branch
      %1895 = sbr.rel (0) target = $region37
    $region36: #{tpu_custom_call.1} parent=1 // pred_region
      %1896 = dma.done [#allocation5], 512
    $region37: #{tpu_custom_call.1} parent=1 // pred_fallthru
      _
    %1897 = vsyncpa [#allocation4], 1
    %1898 = vsyncpa [#allocation7], 1
    %1899 = vsyncpa [#allocation5], 1

</llo_original>
